<compile_context>
chip_gen: v7x
topology: tpu7x:2x2x1
jax: 0.10.0
libtpu: 0.0.40
codegen_flags: <defaults>
</compile_context>

<pallas_src>
import functools

import jax
import jax.numpy as jnp
import numpy as np
from jax.experimental import pallas as pl
from jax.experimental.pallas import tpu as pltpu

OUT_DIM = 256
NEG_SLOPE = 0.2


def _leaky_relu(x, slope=NEG_SLOPE):
    return jnp.where(x > 0, x, slope * x)


def discriminator_kernel(x_ref, small_ref, w2_ref, w3_ref, o_ref):
    # x_ref: (1, 1, tm) lane-dense tile of the batch (batch on lanes).
    x = x_ref[0]                                  # (1, tm)

    # Packed small operands, (D, 8) f32:
    #   col 0: w1 (fc1.weight, (D,1))   col 1: b1
    #   col 2: b2                       col 3: b3
    #   col 4: w4 (fc4.weight^T)        col 5: b4 (broadcast down the column)
    w1 = small_ref[:, 0:1]
    b1 = small_ref[:, 1:2]
    b2 = small_ref[:, 2:3]
    b3 = small_ref[:, 3:4]
    w4 = small_ref[:, 4:5]
    b4 = small_ref[0:1, 5:6]

    # fc1: in_dim == 1 -> broadcasted outer product, batch stays on lanes.
    h = _leaky_relu(w1 * x + b1)                  # (D, tm) f32

    # fc2 / fc3: torch (out, in) weights, y = W @ h + b.
    # MXU: M = K = 256 (full occupancy), N = tm on the lane axis.
    # Operands cast to the weight dtype (bf16 by default); f32 accumulation.
    w2 = w2_ref[...]
    h = jnp.dot(w2, h.astype(w2.dtype),
                preferred_element_type=jnp.float32) + b2
    h = _leaky_relu(h)

    w3 = w3_ref[...]
    h = jnp.dot(w3, h.astype(w3.dtype),
                preferred_element_type=jnp.float32) + b3
    h = _leaky_relu(h)

    # fc4: out_dim == 1 -> VPU multiply + sublane reduce; stays lane-dense.
    y = jnp.sum(w4 * h, axis=0, keepdims=True) + b4    # (1, tm)
    o_ref[0] = jax.nn.sigmoid(y)


def _pick_tile(n, tm):
    """Batch tile on the lane axis: multiple of 256, capped so the grid has
    at least 2 steps (keeps both v7x TensorCores busy via the parallel axis)."""
    half = (n // 2) // 256 * 256
    if half >= 256:
        return min(tm, half)
    return 256


@functools.partial(jax.jit, static_argnames=("tm", "use_bf16_matmul"))
def discriminator_forward(x, params, *, tm=1024, use_bf16_matmul=True):
    """x: (N, 1) float32.  Returns (N, 1) float32."""
    w1, b1, w2, b2, w3, b3, w4, b4 = params
    N = x.shape[0]
    D = w2.shape[0]

    tm_eff = _pick_tile(N, tm)
    n_pad = pl.cdiv(N, tm_eff) * tm_eff
    G = n_pad // tm_eff

    # Lane-dense layout: (N, 1) -> (G, 1, tm), one (1, tm) slab per grid step.
    xf = jnp.pad(x.reshape(N), (0, n_pad - N))
    x_tiles = xf.reshape(G, 1, tm_eff)

    # Pack the six tiny operands into one (D, 8) f32 slab (single DMA / spec).
    small = jnp.concatenate(
        [w1, b1, b2, b3, w4,
         jnp.broadcast_to(b4, (D, 1)),
         jnp.zeros((D, 2), jnp.float32)], axis=1)

    mm_dtype = jnp.bfloat16 if use_bf16_matmul else jnp.float32
    w2k = w2.astype(mm_dtype)
    w3k = w3.astype(mm_dtype)

    wbytes = (w2k.size * w2k.dtype.itemsize + w3k.size * w3k.dtype.itemsize
              + small.size * 4)
    cost = pl.CostEstimate(
        flops=2 * 2 * D * D * n_pad + 4 * D * n_pad,   # fc2+fc3 dominate
        transcendentals=n_pad,                         # one exp per output
        bytes_accessed=8 * n_pad + wbytes,
    )

    full = lambda i: (0, 0)
    out = pl.pallas_call(
        discriminator_kernel,
        out_shape=jax.ShapeDtypeStruct((G, 1, tm_eff), jnp.float32),
        grid_spec=pl.GridSpec(
            grid=(G,),
            in_specs=[
                pl.BlockSpec((1, 1, tm_eff), lambda i: (i, 0, 0)),  # x tile
                pl.BlockSpec((D, 8), full),    # packed w1,b1,b2,b3,w4,b4
                pl.BlockSpec((D, D), full),    # w2 (torch (out, in) layout)
                pl.BlockSpec((D, D), full),    # w3 (torch (out, in) layout)
            ],
            out_specs=pl.BlockSpec((1, 1, tm_eff), lambda i: (i, 0, 0)),
        ),
        compiler_params=pltpu.CompilerParams(
            dimension_semantics=("parallel",),
            vmem_limit_bytes=32 * 1024 * 1024),
        cost_estimate=cost,
    )(x_tiles, small, w2k, w3k)

    return out.reshape(n_pad, 1)[:N]


def init_params(key, out_dim=OUT_DIM, bias=0.5):
    """Deterministic init mirroring the PyTorch geometric_init branch.

    Layouts for the batch-on-lanes kernel:
      w1: (D, 1)  (== torch fc1.weight)          b1: (D, 1)
      w2: (D, D)  (torch (out, in) layout)        b2: (D, 1)
      w3: (D, D)  (torch (out, in) layout)        b3: (D, 1)
      w4: (D, 1)  (torch fc4.weight transposed)   b4: (1, 1)
    """
    k1, k2, k3, k4 = jax.random.split(key, 4)
    std_hidden = np.sqrt(2.0) / np.sqrt(out_dim)

    w1 = std_hidden * jax.random.normal(k1, (out_dim, 1), jnp.float32)
    b1 = jnp.full((out_dim, 1), -bias, jnp.float32)
    w2 = std_hidden * jax.random.normal(k2, (out_dim, out_dim), jnp.float32)
    b2 = jnp.full((out_dim, 1), -bias, jnp.float32)
    w3 = std_hidden * jax.random.normal(k3, (out_dim, out_dim), jnp.float32)
    b3 = jnp.full((out_dim, 1), -bias, jnp.float32)
    w4 = (np.sqrt(np.pi)
          + 1e-4 * jax.random.normal(k4, (out_dim, 1), jnp.float32)
          ).astype(jnp.float32)
    b4 = jnp.full((1, 1), -bias, jnp.float32)
    return (w1, b1, w2, b2, w3, b3, w4, b4)


def reference_forward(x, params):
    """Pure-JAX f32 reference (batch on rows, same math as the torch module)."""
    w1, b1, w2, b2, w3, b3, w4, b4 = params
    h = _leaky_relu(x @ w1.T + b1.T)
    h = _leaky_relu(h @ w2.T + b2.T)
    h = _leaky_relu(h @ w3.T + b3.T)
    return jax.nn.sigmoid(h @ w4 + b4)


if __name__ == "__main__":
    key = jax.random.PRNGKey(0)
    pkey, xkey1, xkey2 = jax.random.split(key, 3)
    params = init_params(pkey)

    # Small batch (exercises pad-and-slice; tile auto-caps to 256 -> G=2).
    N1 = 500
    x1 = jax.random.normal(xkey1, (N1, 1), jnp.float32)
    ref1 = reference_forward(x1, params)

    # f32 matmul path: tight parity with the reference.
    out_f32 = jax.block_until_ready(
        discriminator_forward(x1, params, use_bf16_matmul=False))
    np.testing.assert_allclose(np.asarray(out_f32), np.asarray(ref1),
                               rtol=1e-5, atol=1e-5)

    # Default bf16-MXU path: relaxed tolerance (bf16 weights, f32 accum).
    out_bf16 = jax.block_until_ready(discriminator_forward(x1, params))
    np.testing.assert_allclose(np.asarray(out_bf16), np.asarray(ref1),
                               rtol=2e-2, atol=2e-2)

    # Larger batch exercises the tm=1024 tile-selection path (G=3).
    N2 = 3000
    x2 = jax.random.normal(xkey2, (N2, 1), jnp.float32)
    out2 = jax.block_until_ready(discriminator_forward(x2, params))
    ref2 = reference_forward(x2, params)
    np.testing.assert_allclose(np.asarray(out2), np.asarray(ref2),
                               rtol=2e-2, atol=2e-2)

    print("KERNEL_OK")
</pallas_src>

<mosaic_0001>
module attributes {stable_mosaic.version = 11 : i64} {
  func.func @discriminator_kernel(%arg0: i32, %arg1: memref<1x1x256xf32, #tpu.memory_space<vmem>>, %arg2: memref<256x8xf32, #tpu.memory_space<vmem>>, %arg3: memref<256x256xf32, #tpu.memory_space<vmem>>, %arg4: memref<256x256xf32, #tpu.memory_space<vmem>>, %arg5: memref<1x1x256xf32, #tpu.memory_space<vmem>>) attributes {dimension_semantics = [#tpu.dimension_semantics<parallel>], iteration_bounds = array<i64: 2>, scalar_prefetch = 0 : i64, scratch_operands = 0 : i64, tpu.core_type = #tpu.core_type<tc>, window_params = [{transform_indices = @transform_0, window_bounds = array<i64: 1, 1, 256>}, {pipeline_mode = #tpu.pipeline_mode<synchronous>, transform_indices = @transform_1, window_bounds = array<i64: 256, 8>}, {pipeline_mode = #tpu.pipeline_mode<synchronous>, transform_indices = @transform_2, window_bounds = array<i64: 256, 256>}, {pipeline_mode = #tpu.pipeline_mode<synchronous>, transform_indices = @transform_3, window_bounds = array<i64: 256, 256>}, {transform_indices = @transform_4, window_bounds = array<i64: 1, 1, 256>}]} {
    %c0 = arith.constant 0 : index
    %c0_0 = arith.constant 0 : index
    %c0_1 = arith.constant 0 : index
    %0 = vector.load %arg1[%c0, %c0_0, %c0_1] : memref<1x1x256xf32, #tpu.memory_space<vmem>>, vector<1x1x256xf32>
    %1 = vector.shape_cast %0 : vector<1x1x256xf32> to vector<1x256xf32>
    %c0_2 = arith.constant 0 : index
    %c0_3 = arith.constant 0 : index
    %2 = vector.load %arg2[%c0_2, %c0_3] : memref<256x8xf32, #tpu.memory_space<vmem>>, vector<256x1xf32>
    %c0_4 = arith.constant 0 : index
    %c1 = arith.constant 1 : index
    %3 = vector.load %arg2[%c0_4, %c1] : memref<256x8xf32, #tpu.memory_space<vmem>>, vector<256x1xf32>
    %c0_5 = arith.constant 0 : index
    %c2 = arith.constant 2 : index
    %4 = vector.load %arg2[%c0_5, %c2] : memref<256x8xf32, #tpu.memory_space<vmem>>, vector<256x1xf32>
    %c0_6 = arith.constant 0 : index
    %c3 = arith.constant 3 : index
    %5 = vector.load %arg2[%c0_6, %c3] : memref<256x8xf32, #tpu.memory_space<vmem>>, vector<256x1xf32>
    %c0_7 = arith.constant 0 : index
    %c4 = arith.constant 4 : index
    %6 = vector.load %arg2[%c0_7, %c4] : memref<256x8xf32, #tpu.memory_space<vmem>>, vector<256x1xf32>
    %c0_8 = arith.constant 0 : index
    %c5 = arith.constant 5 : index
    %7 = vector.load %arg2[%c0_8, %c5] : memref<256x8xf32, #tpu.memory_space<vmem>>, vector<1x1xf32>
    %8 = vector.broadcast %2 : vector<256x1xf32> to vector<256x256xf32>
    %9 = vector.broadcast %1 : vector<1x256xf32> to vector<256x256xf32>
    %10 = arith.mulf %8, %9 : vector<256x256xf32>
    %11 = vector.broadcast %3 : vector<256x1xf32> to vector<256x256xf32>
    %12 = arith.addf %10, %11 : vector<256x256xf32>
    %cst = arith.constant 0.000000e+00 : f32
    %13 = vector.broadcast %cst : f32 to vector<256x256xf32>
    %14 = arith.cmpf ogt, %12, %13 : vector<256x256xf32>
    %cst_9 = arith.constant 2.000000e-01 : f32
    %15 = vector.broadcast %cst_9 : f32 to vector<256x256xf32>
    %16 = arith.mulf %15, %12 : vector<256x256xf32>
    %17 = arith.select %14, %12, %16 : vector<256x256xi1>, vector<256x256xf32>
    %c0_10 = arith.constant 0 : index
    %c0_11 = arith.constant 0 : index
    %18 = vector.load %arg3[%c0_10, %c0_11] : memref<256x256xf32, #tpu.memory_space<vmem>>, vector<256x256xf32>
    %cst_12 = arith.constant dense<0.000000e+00> : vector<256x256xf32>
    %19 = tpu.matmul %18, %17, %cst_12 {dimension_numbers = #tpu.dot_dimension_numbers<[1], [0], [0], [1], [0, 0, 1, 1], [], []>} : vector<256x256xf32>, vector<256x256xf32>, vector<256x256xf32> -> vector<256x256xf32>
    %20 = vector.broadcast %4 : vector<256x1xf32> to vector<256x256xf32>
    %21 = arith.addf %19, %20 : vector<256x256xf32>
    %cst_13 = arith.constant 0.000000e+00 : f32
    %22 = vector.broadcast %cst_13 : f32 to vector<256x256xf32>
    %23 = arith.cmpf ogt, %21, %22 : vector<256x256xf32>
    %cst_14 = arith.constant 2.000000e-01 : f32
    %24 = vector.broadcast %cst_14 : f32 to vector<256x256xf32>
    %25 = arith.mulf %24, %21 : vector<256x256xf32>
    %26 = arith.select %23, %21, %25 : vector<256x256xi1>, vector<256x256xf32>
    %c0_15 = arith.constant 0 : index
    %c0_16 = arith.constant 0 : index
    %27 = vector.load %arg4[%c0_15, %c0_16] : memref<256x256xf32, #tpu.memory_space<vmem>>, vector<256x256xf32>
    %cst_17 = arith.constant dense<0.000000e+00> : vector<256x256xf32>
    %28 = tpu.matmul %27, %26, %cst_17 {dimension_numbers = #tpu.dot_dimension_numbers<[1], [0], [0], [1], [0, 0, 1, 1], [], []>} : vector<256x256xf32>, vector<256x256xf32>, vector<256x256xf32> -> vector<256x256xf32>
    %29 = vector.broadcast %5 : vector<256x1xf32> to vector<256x256xf32>
    %30 = arith.addf %28, %29 : vector<256x256xf32>
    %cst_18 = arith.constant 0.000000e+00 : f32
    %31 = vector.broadcast %cst_18 : f32 to vector<256x256xf32>
    %32 = arith.cmpf ogt, %30, %31 : vector<256x256xf32>
    %cst_19 = arith.constant 2.000000e-01 : f32
    %33 = vector.broadcast %cst_19 : f32 to vector<256x256xf32>
    %34 = arith.mulf %33, %30 : vector<256x256xf32>
    %35 = arith.select %32, %30, %34 : vector<256x256xi1>, vector<256x256xf32>
    %36 = vector.broadcast %6 : vector<256x1xf32> to vector<256x256xf32>
    %37 = arith.mulf %36, %35 : vector<256x256xf32>
    %cst_20 = arith.constant dense<0.000000e+00> : vector<256xf32>
    %38 = vector.multi_reduction <add>, %37, %cst_20 [0] : vector<256x256xf32> to vector<256xf32>
    %39 = vector.shape_cast %38 : vector<256xf32> to vector<1x256xf32>
    %40 = vector.broadcast %7 : vector<1x1xf32> to vector<1x256xf32>
    %41 = arith.addf %39, %40 : vector<1x256xf32>
    %42 = arith.negf %41 : vector<1x256xf32>
    %43 = math.exp %42 : vector<1x256xf32>
    %cst_21 = arith.constant 1.000000e+00 : f32
    %44 = vector.broadcast %cst_21 : f32 to vector<1x256xf32>
    %45 = arith.addf %44, %43 : vector<1x256xf32>
    %46 = arith.divf %44, %45 : vector<1x256xf32>
    %c0_22 = arith.constant 0 : index
    %c0_23 = arith.constant 0 : index
    %c0_24 = arith.constant 0 : index
    %47 = vector.load %arg5[%c0_22, %c0_23, %c0_24] : memref<1x1x256xf32, #tpu.memory_space<vmem>>, vector<1x1x256xf32>
    %48 = vector.shape_cast %47 : vector<1x1x256xf32> to vector<1x256xf32>
    %49 = vector.shape_cast %46 : vector<1x256xf32> to vector<1x1x256xf32>
    tpu.vector_store %arg5[%c0_22, %c0_23, %c0_24], %49 {strides = array<i32>} : memref<1x1x256xf32, #tpu.memory_space<vmem>>, vector<1x1x256xf32>,
    return
  }
  func.func @transform_0(%arg0: i32) -> (i32, i32, i32) {
    %c0_i32 = arith.constant 0 : i32
    %c0_i32_0 = arith.constant 0 : i32
    %c0_i32_1 = arith.constant 0 : i32
    return %arg0, %c0_i32, %c0_i32_0 : i32, i32, i32
  }
  func.func @transform_1(%arg0: i32) -> (i32, i32) {
    %c0_i32 = arith.constant 0 : i32
    %c0_i32_0 = arith.constant 0 : i32
    %c0_i32_1 = arith.constant 0 : i32
    return %c0_i32, %c0_i32_0 : i32, i32
  }
  func.func @transform_2(%arg0: i32) -> (i32, i32) {
    %c0_i32 = arith.constant 0 : i32
    %c0_i32_0 = arith.constant 0 : i32
    %c0_i32_1 = arith.constant 0 : i32
    return %c0_i32, %c0_i32_0 : i32, i32
  }
  func.func @transform_3(%arg0: i32) -> (i32, i32) {
    %c0_i32 = arith.constant 0 : i32
    %c0_i32_0 = arith.constant 0 : i32
    %c0_i32_1 = arith.constant 0 : i32
    return %c0_i32, %c0_i32_0 : i32, i32
  }
  func.func @transform_4(%arg0: i32) -> (i32, i32, i32) {
    %c0_i32 = arith.constant 0 : i32
    %c0_i32_0 = arith.constant 0 : i32
    %c0_i32_1 = arith.constant 0 : i32
    return %arg0, %c0_i32, %c0_i32_0 : i32, i32, i32
  }
}

</mosaic_0001>

<llo_original>
// kernel: discriminator_forward.1
$region0: #{discriminator_forward.1}
  #allocation0 [shape = 'u32[]', space=smem, size = 0x4, offset = 0x4, fixed_abs, tag = 'smem constant byte address 0x4 - core index']
  #allocation1 [shape = 'u32[144,128]{1,0:T(1,128)}', space=vmem, size = 0x12000, scoped, tag = 'internal scratch']
  %s0 = inlined_call_operand.vmem [shape: f32[2,1,256], index: 0, kind: input, shape index: {}]
  %s1 = inlined_call_operand.vmem [shape: f32[256,8], index: 1, kind: input, shape index: {}]
  %s2 = inlined_call_operand.hbm [shape: f32[256,256], index: 2, kind: input, shape index: {}]
  %s3 = inlined_call_operand.hbm [shape: f32[256,256], index: 3, kind: input, shape index: {}]
  %s4 = inlined_call_operand.hbm [shape: f32[2,1,256], index: 4, kind: output, shape index: {}]
  %s5 = sld [smem:[#allocation0]]
  $region57: #{discriminator_forward.1} parent=0
    _
  %s7 = ssub.s32 1, %s5
  %s8 = scalar_select 0, %s7, %s5
  $region1: #{discriminator_forward.1} parent=0
    #allocation2 [shape = 'u8[262144]{0}', space=vmem, size = 0x40000, scoped, tag = 'input window, operand 2, single buffered']
    #allocation3 [shape = 's32[2]{0}', space=sflag, size = 0x8, scoped, tag = 'scoped memory for discriminator_forward.1']
    #allocation4 [shape = 's32[2]{0}', space=sflag, size = 0x8, scoped, tag = 'scoped memory for discriminator_forward.1']
    #allocation5 [shape = 'u8[262144]{0}', space=vmem, size = 0x40000, scoped, tag = 'input window, operand 3, single buffered']
    #allocation6 [shape = 's32[1]{0}', space=sflag, size = 0x4, scoped, tag = 'scoped memory for discriminator_forward.1']
    #allocation7 [shape = 'u8[2048]{0}', space=vmem, size = 0x800, scoped, tag = 'output window, operand 0']
    %9 = vsyncpa [#allocation3], 0
    %10 = vsyncpa [#allocation6], 0
    %11 = vsyncpa [#allocation4], 0
    %s12 = scalar_lea.sflag [#allocation4], 1
    %13 = vsyncpa %s12, 0
    loop: start=0, step=1, limit=4
    $region2: #{discriminator_forward.1} parent=1 // loop_pre_header
      _
    $region3: #{discriminator_forward.1} parent=1 // loop_header
      %s15 = sphi 0, %s19
      %p16 = scmp.ge.s32.totalorder %s15, 4
      %s25 = sphi 0, %s27
      %s28 = sphi 0, %s25
      %s29 = sphi 0, %s28
      %s45 = sphi 0, %s29
      %s49 = sphi 0, %s49
      %s51 = sphi 0, %s49
      %s52 = sphi 0, %s51
      %s66 = sphi 0, %s52
      %s70 = sphi 0, %s70
      %s72 = sphi 0, %s70
      %s73 = sphi 0, %s72
      %s87 = sphi 0, %s73
      %s91 = sphi 0, %s91
      %s93 = sphi 0, %s91
      %s94 = sphi 0, %s93
      %s108 = sphi 0, %s94
      %s114 = sphi 0, %s116
      %s117 = sphi 0, %s114
      %s118 = sphi 0, %s117
      %s134 = sphi 0, %s118
    $region4: #{discriminator_forward.1} parent=1 // loop_header_branch
      %18 = sbr.rel (%p16) target = $region8
    $region5: #{discriminator_forward.1} parent=1 // loop_body
      %s20 = ssub.s32 %s15, 1
      %s21 = ssub.s32 %s15, 2
      %s22 = sadd.s32 %s15, 1
      %s23 = ssub.s32 %s15, %s22
      %p24 = scmp.eq.s32.totalorder %s23, 0
      %s26 = sadd.s32 %s25, 1
      %s27 = scalar_select %p24, %s25, %s26
      %p30 = pneg %p24
      %p31 = scmp.eq.s32.totalorder %s15, 1
      %p32 = por %p30, %p31
      %p33 = scmp.ne.s32.totalorder %s25, %s28
      %p34 = scmp.eq.s32.totalorder %s15, 0
      %p35 = por %p33, %p34
      %p36 = scmp.ne.s32.totalorder %s25, %s28
      %p37 = scmp.eq.s32.totalorder %s20, 1
      %p38 = por %p36, %p37
      %p39 = scmp.ne.s32.totalorder %s28, %s29
      %p40 = scmp.eq.s32.totalorder %s20, 0
      %p41 = por %p39, %p40
      %p42 = scmp.ne.s32.totalorder %s28, %s29
      %p43 = scmp.eq.s32.totalorder %s21, 1
      %p44 = por %p42, %p43
      %p46 = scmp.ne.s32.totalorder %s29, %s45
      %p47 = scmp.eq.s32.totalorder %s21, 0
      %p48 = por %p46, %p47
      %s50 = sadd.s32 %s49, 1
      %p53 = scmp.eq.s32.totalorder %s15, 1
      %p54 = scmp.ne.s32.totalorder %s49, %s51
      %p55 = scmp.eq.s32.totalorder %s15, 0
      %p56 = por %p54, %p55
      %p57 = scmp.ne.s32.totalorder %s49, %s51
      %p58 = scmp.eq.s32.totalorder %s20, 1
      %p59 = por %p57, %p58
      %p60 = scmp.ne.s32.totalorder %s51, %s52
      %p61 = scmp.eq.s32.totalorder %s20, 0
      %p62 = por %p60, %p61
      %p63 = scmp.ne.s32.totalorder %s51, %s52
      %p64 = scmp.eq.s32.totalorder %s21, 1
      %p65 = por %p63, %p64
      %p67 = scmp.ne.s32.totalorder %s52, %s66
      %p68 = scmp.eq.s32.totalorder %s21, 0
      %p69 = por %p67, %p68
      %s71 = sadd.s32 %s70, 1
      %p74 = scmp.eq.s32.totalorder %s15, 1
      %p75 = scmp.ne.s32.totalorder %s70, %s72
      %p76 = scmp.eq.s32.totalorder %s15, 0
      %p77 = por %p75, %p76
      %p78 = scmp.ne.s32.totalorder %s70, %s72
      %p79 = scmp.eq.s32.totalorder %s20, 1
      %p80 = por %p78, %p79
      %p81 = scmp.ne.s32.totalorder %s72, %s73
      %p82 = scmp.eq.s32.totalorder %s20, 0
      %p83 = por %p81, %p82
      %p84 = scmp.ne.s32.totalorder %s72, %s73
      %p85 = scmp.eq.s32.totalorder %s21, 1
      %p86 = por %p84, %p85
      %p88 = scmp.ne.s32.totalorder %s73, %s87
      %p89 = scmp.eq.s32.totalorder %s21, 0
      %p90 = por %p88, %p89
      %s92 = sadd.s32 %s91, 1
      %p95 = scmp.eq.s32.totalorder %s15, 1
      %p96 = scmp.ne.s32.totalorder %s91, %s93
      %p97 = scmp.eq.s32.totalorder %s15, 0
      %p98 = por %p96, %p97
      %p99 = scmp.ne.s32.totalorder %s91, %s93
      %p100 = scmp.eq.s32.totalorder %s20, 1
      %p101 = por %p99, %p100
      %p102 = scmp.ne.s32.totalorder %s93, %s94
      %p103 = scmp.eq.s32.totalorder %s20, 0
      %p104 = por %p102, %p103
      %p105 = scmp.ne.s32.totalorder %s93, %s94
      %p106 = scmp.eq.s32.totalorder %s21, 1
      %p107 = por %p105, %p106
      %p109 = scmp.ne.s32.totalorder %s94, %s108
      %p110 = scmp.eq.s32.totalorder %s21, 0
      %p111 = por %p109, %p110
      %s112 = ssub.s32 %s15, %s22
      %p113 = scmp.eq.s32.totalorder %s112, 0
      %s115 = sadd.s32 %s114, 1
      %s116 = scalar_select %p113, %s114, %s115
      %p119 = pneg %p113
      %p120 = scmp.eq.s32.totalorder %s15, 1
      %p121 = por %p119, %p120
      %p122 = scmp.ne.s32.totalorder %s114, %s117
      %p123 = scmp.eq.s32.totalorder %s15, 0
      %p124 = por %p122, %p123
      %p125 = scmp.ne.s32.totalorder %s114, %s117
      %p126 = scmp.eq.s32.totalorder %s20, 1
      %p127 = por %p125, %p126
      %p128 = scmp.ne.s32.totalorder %s117, %s118
      %p129 = scmp.eq.s32.totalorder %s20, 0
      %p130 = por %p128, %p129
      %p131 = scmp.ne.s32.totalorder %s117, %s118
      %p132 = scmp.eq.s32.totalorder %s21, 1
      %p133 = por %p131, %p132
      %p135 = scmp.ne.s32.totalorder %s118, %s134
      %p136 = scmp.eq.s32.totalorder %s21, 0
      %p137 = por %p135, %p136
      %p138 = scmp.le.s32.totalorder 1, %s15
      %p139 = scmp.lt.s32.totalorder %s15, 3
      %p140 = pnand %p138, %p139
      %p141 = pneg %p140
      // Predicated region
      $region9: #{discriminator_forward.1} parent=5 // pred_check
        _
      $region10: #{discriminator_forward.1} parent=5 // pred_check_branch
        %143 = sbr.rel (%p140) target = $region12
      $region11: #{discriminator_forward.1} parent=5 // pred_region
        %s144 = ssub.s32 %s15, 1
        // Predicated region
        $region13: #{discriminator_forward.1} parent=11 // pred_check
          %p145 = pneg %p62
        $region14: #{discriminator_forward.1} parent=11 // pred_check_branch
          %147 = sbr.rel (%p145) target = $region16
        $region15: #{discriminator_forward.1} parent=11 // pred_region
          _
        $region16: #{discriminator_forward.1} parent=11 // pred_fallthru
          _
        // Predicated region
        $region17: #{discriminator_forward.1} parent=11 // pred_check
          %p148 = pneg %p83
        $region18: #{discriminator_forward.1} parent=11 // pred_check_branch
          %150 = sbr.rel (%p148) target = $region20
        $region19: #{discriminator_forward.1} parent=11 // pred_region
          %s152 = ssub.s32 8192, 8192
          %153 = vsyncadd [#allocation3], %s152
          %s154 = sshll.u32 [#allocation2], 4
          %s155 = int_to_ptr.vmem [resolvable:$true] %s154
          %160 = dma.hbm_to_vmem [thread:$0]  %s2, 8192, %s155, [#allocation3], 256, 256, 16
        $region20: #{discriminator_forward.1} parent=11 // pred_fallthru
          _
        // Predicated region
        $region21: #{discriminator_forward.1} parent=11 // pred_check
          %p161 = pneg %p104
        $region22: #{discriminator_forward.1} parent=11 // pred_check_branch
          %163 = sbr.rel (%p161) target = $region24
        $region23: #{discriminator_forward.1} parent=11 // pred_region
          %s165 = ssub.s32 8192, 8192
          %166 = vsyncadd [#allocation6], %s165
          %s167 = sshll.u32 [#allocation5], 4
          %s168 = int_to_ptr.vmem [resolvable:$true] %s167
          %173 = dma.hbm_to_vmem [thread:$0]  %s3, 8192, %s168, [#allocation6], 256, 256, 16
        $region24: #{discriminator_forward.1} parent=11 // pred_fallthru
          _
      $region12: #{discriminator_forward.1} parent=5 // pred_fallthru
        _
      %p174 = scmp.lt.s32.totalorder %s15, 2
      // Predicated region
      $region25: #{discriminator_forward.1} parent=5 // pred_check
        %p175 = pneg %p174
      $region26: #{discriminator_forward.1} parent=5 // pred_check_branch
        %177 = sbr.rel (%p175) target = $region28
      $region27: #{discriminator_forward.1} parent=5 // pred_region
        // Predicated region
        $region29: #{discriminator_forward.1} parent=27 // pred_check
          %p178 = pneg %p35
        $region30: #{discriminator_forward.1} parent=27 // pred_check_branch
          %180 = sbr.rel (%p178) target = $region32
        $region31: #{discriminator_forward.1} parent=27 // pred_region
          %p181 = scmp.lt.s32.totalorder %s15, 1
          %s182 = scalar_select %p181, %s15, 1
          %s183 = smul.addr %s182, 2
          %s184 = scalar_lea.vmem %s0, %s183
        $region32: #{discriminator_forward.1} parent=27 // pred_fallthru
          _
      $region28: #{discriminator_forward.1} parent=5 // pred_fallthru
        _
      %p185 = scmp.le.s32.totalorder 1, %s15
      %p186 = scmp.lt.s32.totalorder %s15, 3
      %p187 = pnand %p185, %p186
      %p188 = pneg %p187
      // Predicated region
      $region33: #{discriminator_forward.1} parent=5 // pred_check
        _
      $region34: #{discriminator_forward.1} parent=5 // pred_check_branch
        %190 = sbr.rel (%p187) target = $region36
      $region35: #{discriminator_forward.1} parent=5 // pred_region
        %s191 = ssub.s32 %s15, 1
        // Predicated region
        $region37: #{discriminator_forward.1} parent=35 // pred_check
          %p192 = pneg %p83
        $region38: #{discriminator_forward.1} parent=35 // pred_check_branch
          %194 = sbr.rel (%p192) target = $region40
        $region39: #{discriminator_forward.1} parent=35 // pred_region
          %195 = dma.done [#allocation3], 8192
        $region40: #{discriminator_forward.1} parent=35 // pred_fallthru
          _
        // Predicated region
        $region41: #{discriminator_forward.1} parent=35 // pred_check
          %p196 = pneg %p104
        $region42: #{discriminator_forward.1} parent=35 // pred_check_branch
          %198 = sbr.rel (%p196) target = $region44
        $region43: #{discriminator_forward.1} parent=35 // pred_region
          %199 = dma.done [#allocation6], 8192
        $region44: #{discriminator_forward.1} parent=35 // pred_fallthru
          _
        %p200 = scmp.lt.s32.totalorder %s20, 1
        %s201 = scalar_select %p200, %s20, 1
        %s202 = smul.addr %s201, 2
        %s203 = scalar_lea.vmem %s0, %s202
        %p204 = pneg %p41
        %p205 = pneg %p38
        %p206 = pneg %p62
        %p207 = pneg %p59
        %p208 = pneg %p83
        %p209 = pneg %p80
        %p210 = pneg %p104
        %p211 = pneg %p101
        %p212 = pneg %p130
        %p213 = pneg %p127
        %s214 = sand.u32 %s117, 1
        %s215 = scalar_lea.sflag [#allocation4], %s214
        %s216 = sand.u32 %s117, 1
        %s217 = smul.addr %s216, 2
        %s218 = scalar_lea.vmem [#allocation7], %s217
        %p219 = scmp.lt.s32.totalorder %s20, 1
        %s220 = scalar_select %p219, %s20, 1
        %s221 = smul.addr %s220, 2
        %s222 = scalar_lea.vmem %s0, %s221
        %v223 = vld [vmem:[%s222] sm:$0x3]
        %v224 = vld [vmem:[%s1] sm:$0xff]
        %v225 = vld [vmem:[%s1 + $0x8] sm:$0xff]
        %v226 = vld [vmem:[%s1 + $0x10] sm:$0xff]
        %v227 = vld [vmem:[%s1 + $0x18] sm:$0xff]
        %v228 = vld [vmem:[%s1 + $0x20] sm:$0xff]
        %v229 = vld [vmem:[%s1 + $0x28] sm:$0xff]
        %v230 = vld [vmem:[%s1 + $0x30] sm:$0xff]
        %v231 = vld [vmem:[%s1 + $0x38] sm:$0xff]
        %v232 = vld [vmem:[%s1 + $0x40] sm:$0xff]
        %v233 = vld [vmem:[%s1 + $0x48] sm:$0xff]
        %v234 = vld [vmem:[%s1 + $0x50] sm:$0xff]
        %v235 = vld [vmem:[%s1 + $0x58] sm:$0xff]
        %v236 = vld [vmem:[%s1 + $0x60] sm:$0xff]
        %v237 = vld [vmem:[%s1 + $0x68] sm:$0xff]
        %v238 = vld [vmem:[%s1 + $0x70] sm:$0xff]
        %v239 = vld [vmem:[%s1 + $0x78] sm:$0xff]
        %v240 = vld [vmem:[%s1 + $0x80] sm:$0xff]
        %v241 = vld [vmem:[%s1 + $0x88] sm:$0xff]
        %v242 = vld [vmem:[%s1 + $0x90] sm:$0xff]
        %v243 = vld [vmem:[%s1 + $0x98] sm:$0xff]
        %v244 = vld [vmem:[%s1 + $0xa0] sm:$0xff]
        %v245 = vld [vmem:[%s1 + $0xa8] sm:$0xff]
        %v246 = vld [vmem:[%s1 + $0xb0] sm:$0xff]
        %v247 = vld [vmem:[%s1 + $0xb8] sm:$0xff]
        %v248 = vld [vmem:[%s1 + $0xc0] sm:$0xff]
        %v249 = vld [vmem:[%s1 + $0xc8] sm:$0xff]
        %v250 = vld [vmem:[%s1 + $0xd0] sm:$0xff]
        %v251 = vld [vmem:[%s1 + $0xd8] sm:$0xff]
        %v252 = vld [vmem:[%s1 + $0xe0] sm:$0xff]
        %v253 = vld [vmem:[%s1 + $0xe8] sm:$0xff]
        %v254 = vld [vmem:[%s1 + $0xf0] sm:$0xff]
        %v255 = vld [vmem:[%s1 + $0xf8] sm:$0xff]
        %v256 = vld [vmem:[%s1] sm:$0x1]
        %258 = vset.pattern.permute.xlu0 0
        %259 = vperm.xlu0 %258, %v224
        %v260 = vpop.permute.xlu0 %259
        %263 = vset.pattern.permute.xlu0 0
        %264 = vperm.xlu0 %263, %v225
        %v265 = vpop.permute.xlu0 %264
        %268 = vset.pattern.permute.xlu0 0
        %269 = vperm.xlu0 %268, %v226
        %v270 = vpop.permute.xlu0 %269
        %273 = vset.pattern.permute.xlu0 0
        %274 = vperm.xlu0 %273, %v227
        %v275 = vpop.permute.xlu0 %274
        %278 = vset.pattern.permute.xlu0 0
        %279 = vperm.xlu0 %278, %v228
        %v280 = vpop.permute.xlu0 %279
        %283 = vset.pattern.permute.xlu0 0
        %284 = vperm.xlu0 %283, %v229
        %v285 = vpop.permute.xlu0 %284
        %288 = vset.pattern.permute.xlu0 0
        %289 = vperm.xlu0 %288, %v230
        %v290 = vpop.permute.xlu0 %289
        %293 = vset.pattern.permute.xlu0 0
        %294 = vperm.xlu0 %293, %v231
        %v295 = vpop.permute.xlu0 %294
        %298 = vset.pattern.permute.xlu0 0
        %299 = vperm.xlu0 %298, %v232
        %v300 = vpop.permute.xlu0 %299
        %303 = vset.pattern.permute.xlu0 0
        %304 = vperm.xlu0 %303, %v233
        %v305 = vpop.permute.xlu0 %304
        %308 = vset.pattern.permute.xlu0 0
        %309 = vperm.xlu0 %308, %v234
        %v310 = vpop.permute.xlu0 %309
        %313 = vset.pattern.permute.xlu0 0
        %314 = vperm.xlu0 %313, %v235
        %v315 = vpop.permute.xlu0 %314
        %318 = vset.pattern.permute.xlu0 0
        %319 = vperm.xlu0 %318, %v236
        %v320 = vpop.permute.xlu0 %319
        %323 = vset.pattern.permute.xlu0 0
        %324 = vperm.xlu0 %323, %v237
        %v325 = vpop.permute.xlu0 %324
        %328 = vset.pattern.permute.xlu0 0
        %329 = vperm.xlu0 %328, %v238
        %v330 = vpop.permute.xlu0 %329
        %333 = vset.pattern.permute.xlu0 0
        %334 = vperm.xlu0 %333, %v239
        %v335 = vpop.permute.xlu0 %334
        %338 = vset.pattern.permute.xlu0 0
        %339 = vperm.xlu0 %338, %v240
        %v340 = vpop.permute.xlu0 %339
        %343 = vset.pattern.permute.xlu0 0
        %344 = vperm.xlu0 %343, %v241
        %v345 = vpop.permute.xlu0 %344
        %348 = vset.pattern.permute.xlu0 0
        %349 = vperm.xlu0 %348, %v242
        %v350 = vpop.permute.xlu0 %349
        %353 = vset.pattern.permute.xlu0 0
        %354 = vperm.xlu0 %353, %v243
        %v355 = vpop.permute.xlu0 %354
        %358 = vset.pattern.permute.xlu0 0
        %359 = vperm.xlu0 %358, %v244
        %v360 = vpop.permute.xlu0 %359
        %363 = vset.pattern.permute.xlu0 0
        %364 = vperm.xlu0 %363, %v245
        %v365 = vpop.permute.xlu0 %364
        %368 = vset.pattern.permute.xlu0 0
        %369 = vperm.xlu0 %368, %v246
        %v370 = vpop.permute.xlu0 %369
        %373 = vset.pattern.permute.xlu0 0
        %374 = vperm.xlu0 %373, %v247
        %v375 = vpop.permute.xlu0 %374
        %378 = vset.pattern.permute.xlu0 0
        %379 = vperm.xlu0 %378, %v248
        %v380 = vpop.permute.xlu0 %379
        %383 = vset.pattern.permute.xlu0 0
        %384 = vperm.xlu0 %383, %v249
        %v385 = vpop.permute.xlu0 %384
        %388 = vset.pattern.permute.xlu0 0
        %389 = vperm.xlu0 %388, %v250
        %v390 = vpop.permute.xlu0 %389
        %393 = vset.pattern.permute.xlu0 0
        %394 = vperm.xlu0 %393, %v251
        %v395 = vpop.permute.xlu0 %394
        %398 = vset.pattern.permute.xlu0 0
        %399 = vperm.xlu0 %398, %v252
        %v400 = vpop.permute.xlu0 %399
        %403 = vset.pattern.permute.xlu0 0
        %404 = vperm.xlu0 %403, %v253
        %v405 = vpop.permute.xlu0 %404
        %408 = vset.pattern.permute.xlu0 0
        %409 = vperm.xlu0 %408, %v254
        %v410 = vpop.permute.xlu0 %409
        %413 = vset.pattern.permute.xlu0 0
        %414 = vperm.xlu0 %413, %v255
        %v415 = vpop.permute.xlu0 %414
        %v418 = vlaneseq
        %v419 = vshrl.u32 %v418, 7
        %v420 = vsub.s32 0, %v419
        %v421 = vrot.slane %v223, %v420
        %v422 = vlaneseq
        %v423 = vshrl.u32 %v422, 7
        %v424 = vsub.s32 1, %v423
        %v425 = vrot.slane %v223, %v424
        %v428 = vmul.f32 %v260, %v421
        %v429 = vmul.f32 %v260, %v425
        %v430 = vmul.f32 %v265, %v421
        %v431 = vmul.f32 %v265, %v425
        %v432 = vmul.f32 %v270, %v421
        %v433 = vmul.f32 %v270, %v425
        %v434 = vmul.f32 %v275, %v421
        %v435 = vmul.f32 %v275, %v425
        %v436 = vmul.f32 %v280, %v421
        %v437 = vmul.f32 %v280, %v425
        %v438 = vmul.f32 %v285, %v421
        %v439 = vmul.f32 %v285, %v425
        %v440 = vmul.f32 %v290, %v421
        %v441 = vmul.f32 %v290, %v425
        %v442 = vmul.f32 %v295, %v421
        %v443 = vmul.f32 %v295, %v425
        %v444 = vmul.f32 %v300, %v421
        %v445 = vmul.f32 %v300, %v425
        %v446 = vmul.f32 %v305, %v421
        %v447 = vmul.f32 %v305, %v425
        %v448 = vmul.f32 %v310, %v421
        %v449 = vmul.f32 %v310, %v425
        %v450 = vmul.f32 %v315, %v421
        %v451 = vmul.f32 %v315, %v425
        %v452 = vmul.f32 %v320, %v421
        %v453 = vmul.f32 %v320, %v425
        %v454 = vmul.f32 %v325, %v421
        %v455 = vmul.f32 %v325, %v425
        %v456 = vmul.f32 %v330, %v421
        %v457 = vmul.f32 %v330, %v425
        %v458 = vmul.f32 %v335, %v421
        %v459 = vmul.f32 %v335, %v425
        %v460 = vmul.f32 %v340, %v421
        %v461 = vmul.f32 %v340, %v425
        %v462 = vmul.f32 %v345, %v421
        %v463 = vmul.f32 %v345, %v425
        %v464 = vmul.f32 %v350, %v421
        %v465 = vmul.f32 %v350, %v425
        %v466 = vmul.f32 %v355, %v421
        %v467 = vmul.f32 %v355, %v425
        %v468 = vmul.f32 %v360, %v421
        %v469 = vmul.f32 %v360, %v425
        %v470 = vmul.f32 %v365, %v421
        %v471 = vmul.f32 %v365, %v425
        %v472 = vmul.f32 %v370, %v421
        %v473 = vmul.f32 %v370, %v425
        %v474 = vmul.f32 %v375, %v421
        %v475 = vmul.f32 %v375, %v425
        %v476 = vmul.f32 %v380, %v421
        %v477 = vmul.f32 %v380, %v425
        %v478 = vmul.f32 %v385, %v421
        %v479 = vmul.f32 %v385, %v425
        %v480 = vmul.f32 %v390, %v421
        %v481 = vmul.f32 %v390, %v425
        %v482 = vmul.f32 %v395, %v421
        %v483 = vmul.f32 %v395, %v425
        %v484 = vmul.f32 %v400, %v421
        %v485 = vmul.f32 %v400, %v425
        %v486 = vmul.f32 %v405, %v421
        %v487 = vmul.f32 %v405, %v425
        %v488 = vmul.f32 %v410, %v421
        %v489 = vmul.f32 %v410, %v425
        %v490 = vmul.f32 %v415, %v421
        %v491 = vmul.f32 %v415, %v425
        %492 = vset.pattern.permute.xlu0 1
        %493 = vperm.xlu0 %492, %v224
        %v494 = vpop.permute.xlu0 %493
        %496 = vset.pattern.permute.xlu0 1
        %497 = vperm.xlu0 %496, %v225
        %v498 = vpop.permute.xlu0 %497
        %500 = vset.pattern.permute.xlu0 1
        %501 = vperm.xlu0 %500, %v226
        %v502 = vpop.permute.xlu0 %501
        %504 = vset.pattern.permute.xlu0 1
        %505 = vperm.xlu0 %504, %v227
        %v506 = vpop.permute.xlu0 %505
        %508 = vset.pattern.permute.xlu0 1
        %509 = vperm.xlu0 %508, %v228
        %v510 = vpop.permute.xlu0 %509
        %512 = vset.pattern.permute.xlu0 1
        %513 = vperm.xlu0 %512, %v229
        %v514 = vpop.permute.xlu0 %513
        %516 = vset.pattern.permute.xlu0 1
        %517 = vperm.xlu0 %516, %v230
        %v518 = vpop.permute.xlu0 %517
        %520 = vset.pattern.permute.xlu0 1
        %521 = vperm.xlu0 %520, %v231
        %v522 = vpop.permute.xlu0 %521
        %524 = vset.pattern.permute.xlu0 1
        %525 = vperm.xlu0 %524, %v232
        %v526 = vpop.permute.xlu0 %525
        %528 = vset.pattern.permute.xlu0 1
        %529 = vperm.xlu0 %528, %v233
        %v530 = vpop.permute.xlu0 %529
        %532 = vset.pattern.permute.xlu0 1
        %533 = vperm.xlu0 %532, %v234
        %v534 = vpop.permute.xlu0 %533
        %536 = vset.pattern.permute.xlu0 1
        %537 = vperm.xlu0 %536, %v235
        %v538 = vpop.permute.xlu0 %537
        %540 = vset.pattern.permute.xlu0 1
        %541 = vperm.xlu0 %540, %v236
        %v542 = vpop.permute.xlu0 %541
        %544 = vset.pattern.permute.xlu0 1
        %545 = vperm.xlu0 %544, %v237
        %v546 = vpop.permute.xlu0 %545
        %548 = vset.pattern.permute.xlu0 1
        %549 = vperm.xlu0 %548, %v238
        %v550 = vpop.permute.xlu0 %549
        %552 = vset.pattern.permute.xlu0 1
        %553 = vperm.xlu0 %552, %v239
        %v554 = vpop.permute.xlu0 %553
        %556 = vset.pattern.permute.xlu0 1
        %557 = vperm.xlu0 %556, %v240
        %v558 = vpop.permute.xlu0 %557
        %560 = vset.pattern.permute.xlu0 1
        %561 = vperm.xlu0 %560, %v241
        %v562 = vpop.permute.xlu0 %561
        %564 = vset.pattern.permute.xlu0 1
        %565 = vperm.xlu0 %564, %v242
        %v566 = vpop.permute.xlu0 %565
        %568 = vset.pattern.permute.xlu0 1
        %569 = vperm.xlu0 %568, %v243
        %v570 = vpop.permute.xlu0 %569
        %572 = vset.pattern.permute.xlu0 1
        %573 = vperm.xlu0 %572, %v244
        %v574 = vpop.permute.xlu0 %573
        %576 = vset.pattern.permute.xlu0 1
        %577 = vperm.xlu0 %576, %v245
        %v578 = vpop.permute.xlu0 %577
        %580 = vset.pattern.permute.xlu0 1
        %581 = vperm.xlu0 %580, %v246
        %v582 = vpop.permute.xlu0 %581
        %584 = vset.pattern.permute.xlu0 1
        %585 = vperm.xlu0 %584, %v247
        %v586 = vpop.permute.xlu0 %585
        %588 = vset.pattern.permute.xlu0 1
        %589 = vperm.xlu0 %588, %v248
        %v590 = vpop.permute.xlu0 %589
        %592 = vset.pattern.permute.xlu0 1
        %593 = vperm.xlu0 %592, %v249
        %v594 = vpop.permute.xlu0 %593
        %596 = vset.pattern.permute.xlu0 1
        %597 = vperm.xlu0 %596, %v250
        %v598 = vpop.permute.xlu0 %597
        %600 = vset.pattern.permute.xlu0 1
        %601 = vperm.xlu0 %600, %v251
        %v602 = vpop.permute.xlu0 %601
        %604 = vset.pattern.permute.xlu0 1
        %605 = vperm.xlu0 %604, %v252
        %v606 = vpop.permute.xlu0 %605
        %608 = vset.pattern.permute.xlu0 1
        %609 = vperm.xlu0 %608, %v253
        %v610 = vpop.permute.xlu0 %609
        %612 = vset.pattern.permute.xlu0 1
        %613 = vperm.xlu0 %612, %v254
        %v614 = vpop.permute.xlu0 %613
        %616 = vset.pattern.permute.xlu0 1
        %617 = vperm.xlu0 %616, %v255
        %v618 = vpop.permute.xlu0 %617
        %v620 = vadd.f32 %v428, %v494
        %v621 = vadd.f32 %v429, %v494
        %v622 = vadd.f32 %v430, %v498
        %v623 = vadd.f32 %v431, %v498
        %v624 = vadd.f32 %v432, %v502
        %v625 = vadd.f32 %v433, %v502
        %v626 = vadd.f32 %v434, %v506
        %v627 = vadd.f32 %v435, %v506
        %v628 = vadd.f32 %v436, %v510
        %v629 = vadd.f32 %v437, %v510
        %v630 = vadd.f32 %v438, %v514
        %v631 = vadd.f32 %v439, %v514
        %v632 = vadd.f32 %v440, %v518
        %v633 = vadd.f32 %v441, %v518
        %v634 = vadd.f32 %v442, %v522
        %v635 = vadd.f32 %v443, %v522
        %v636 = vadd.f32 %v444, %v526
        %v637 = vadd.f32 %v445, %v526
        %v638 = vadd.f32 %v446, %v530
        %v639 = vadd.f32 %v447, %v530
        %v640 = vadd.f32 %v448, %v534
        %v641 = vadd.f32 %v449, %v534
        %v642 = vadd.f32 %v450, %v538
        %v643 = vadd.f32 %v451, %v538
        %v644 = vadd.f32 %v452, %v542
        %v645 = vadd.f32 %v453, %v542
        %v646 = vadd.f32 %v454, %v546
        %v647 = vadd.f32 %v455, %v546
        %v648 = vadd.f32 %v456, %v550
        %v649 = vadd.f32 %v457, %v550
        %v650 = vadd.f32 %v458, %v554
        %v651 = vadd.f32 %v459, %v554
        %v652 = vadd.f32 %v460, %v558
        %v653 = vadd.f32 %v461, %v558
        %v654 = vadd.f32 %v462, %v562
        %v655 = vadd.f32 %v463, %v562
        %v656 = vadd.f32 %v464, %v566
        %v657 = vadd.f32 %v465, %v566
        %v658 = vadd.f32 %v466, %v570
        %v659 = vadd.f32 %v467, %v570
        %v660 = vadd.f32 %v468, %v574
        %v661 = vadd.f32 %v469, %v574
        %v662 = vadd.f32 %v470, %v578
        %v663 = vadd.f32 %v471, %v578
        %v664 = vadd.f32 %v472, %v582
        %v665 = vadd.f32 %v473, %v582
        %v666 = vadd.f32 %v474, %v586
        %v667 = vadd.f32 %v475, %v586
        %v668 = vadd.f32 %v476, %v590
        %v669 = vadd.f32 %v477, %v590
        %v670 = vadd.f32 %v478, %v594
        %v671 = vadd.f32 %v479, %v594
        %v672 = vadd.f32 %v480, %v598
        %v673 = vadd.f32 %v481, %v598
        %v674 = vadd.f32 %v482, %v602
        %v675 = vadd.f32 %v483, %v602
        %v676 = vadd.f32 %v484, %v606
        %v677 = vadd.f32 %v485, %v606
        %v678 = vadd.f32 %v486, %v610
        %v679 = vadd.f32 %v487, %v610
        %v680 = vadd.f32 %v488, %v614
        %v681 = vadd.f32 %v489, %v614
        %v682 = vadd.f32 %v490, %v618
        %v683 = vadd.f32 %v491, %v618
        %vm684 = vcmp.gt.f32.partialorder %v620, 0.0
        %vm685 = vcmp.gt.f32.partialorder %v621, 0.0
        %vm686 = vcmp.gt.f32.partialorder %v622, 0.0
        %vm687 = vcmp.gt.f32.partialorder %v623, 0.0
        %vm688 = vcmp.gt.f32.partialorder %v624, 0.0
        %vm689 = vcmp.gt.f32.partialorder %v625, 0.0
        %vm690 = vcmp.gt.f32.partialorder %v626, 0.0
        %vm691 = vcmp.gt.f32.partialorder %v627, 0.0
        %vm692 = vcmp.gt.f32.partialorder %v628, 0.0
        %vm693 = vcmp.gt.f32.partialorder %v629, 0.0
        %vm694 = vcmp.gt.f32.partialorder %v630, 0.0
        %vm695 = vcmp.gt.f32.partialorder %v631, 0.0
        %vm696 = vcmp.gt.f32.partialorder %v632, 0.0
        %vm697 = vcmp.gt.f32.partialorder %v633, 0.0
        %vm698 = vcmp.gt.f32.partialorder %v634, 0.0
        %vm699 = vcmp.gt.f32.partialorder %v635, 0.0
        %vm700 = vcmp.gt.f32.partialorder %v636, 0.0
        %vm701 = vcmp.gt.f32.partialorder %v637, 0.0
        %vm702 = vcmp.gt.f32.partialorder %v638, 0.0
        %vm703 = vcmp.gt.f32.partialorder %v639, 0.0
        %vm704 = vcmp.gt.f32.partialorder %v640, 0.0
        %vm705 = vcmp.gt.f32.partialorder %v641, 0.0
        %vm706 = vcmp.gt.f32.partialorder %v642, 0.0
        %vm707 = vcmp.gt.f32.partialorder %v643, 0.0
        %vm708 = vcmp.gt.f32.partialorder %v644, 0.0
        %vm709 = vcmp.gt.f32.partialorder %v645, 0.0
        %vm710 = vcmp.gt.f32.partialorder %v646, 0.0
        %vm711 = vcmp.gt.f32.partialorder %v647, 0.0
        %vm712 = vcmp.gt.f32.partialorder %v648, 0.0
        %vm713 = vcmp.gt.f32.partialorder %v649, 0.0
        %vm714 = vcmp.gt.f32.partialorder %v650, 0.0
        %vm715 = vcmp.gt.f32.partialorder %v651, 0.0
        %vm716 = vcmp.gt.f32.partialorder %v652, 0.0
        %vm717 = vcmp.gt.f32.partialorder %v653, 0.0
        %vm718 = vcmp.gt.f32.partialorder %v654, 0.0
        %vm719 = vcmp.gt.f32.partialorder %v655, 0.0
        %vm720 = vcmp.gt.f32.partialorder %v656, 0.0
        %vm721 = vcmp.gt.f32.partialorder %v657, 0.0
        %vm722 = vcmp.gt.f32.partialorder %v658, 0.0
        %vm723 = vcmp.gt.f32.partialorder %v659, 0.0
        %vm724 = vcmp.gt.f32.partialorder %v660, 0.0
        %vm725 = vcmp.gt.f32.partialorder %v661, 0.0
        %vm726 = vcmp.gt.f32.partialorder %v662, 0.0
        %vm727 = vcmp.gt.f32.partialorder %v663, 0.0
        %vm728 = vcmp.gt.f32.partialorder %v664, 0.0
        %vm729 = vcmp.gt.f32.partialorder %v665, 0.0
        %vm730 = vcmp.gt.f32.partialorder %v666, 0.0
        %vm731 = vcmp.gt.f32.partialorder %v667, 0.0
        %vm732 = vcmp.gt.f32.partialorder %v668, 0.0
        %vm733 = vcmp.gt.f32.partialorder %v669, 0.0
        %vm734 = vcmp.gt.f32.partialorder %v670, 0.0
        %vm735 = vcmp.gt.f32.partialorder %v671, 0.0
        %vm736 = vcmp.gt.f32.partialorder %v672, 0.0
        %vm737 = vcmp.gt.f32.partialorder %v673, 0.0
        %vm738 = vcmp.gt.f32.partialorder %v674, 0.0
        %vm739 = vcmp.gt.f32.partialorder %v675, 0.0
        %vm740 = vcmp.gt.f32.partialorder %v676, 0.0
        %vm741 = vcmp.gt.f32.partialorder %v677, 0.0
        %vm742 = vcmp.gt.f32.partialorder %v678, 0.0
        %vm743 = vcmp.gt.f32.partialorder %v679, 0.0
        %vm744 = vcmp.gt.f32.partialorder %v680, 0.0
        %vm745 = vcmp.gt.f32.partialorder %v681, 0.0
        %vm746 = vcmp.gt.f32.partialorder %v682, 0.0
        %vm747 = vcmp.gt.f32.partialorder %v683, 0.0
        %v748 = vmul.f32 %v620, 0.2
        %v749 = vmul.f32 %v621, 0.2
        %v750 = vmul.f32 %v622, 0.2
        %v751 = vmul.f32 %v623, 0.2
        %v752 = vmul.f32 %v624, 0.2
        %v753 = vmul.f32 %v625, 0.2
        %v754 = vmul.f32 %v626, 0.2
        %v755 = vmul.f32 %v627, 0.2
        %v756 = vmul.f32 %v628, 0.2
        %v757 = vmul.f32 %v629, 0.2
        %v758 = vmul.f32 %v630, 0.2
        %v759 = vmul.f32 %v631, 0.2
        %v760 = vmul.f32 %v632, 0.2
        %v761 = vmul.f32 %v633, 0.2
        %v762 = vmul.f32 %v634, 0.2
        %v763 = vmul.f32 %v635, 0.2
        %v764 = vmul.f32 %v636, 0.2
        %v765 = vmul.f32 %v637, 0.2
        %v766 = vmul.f32 %v638, 0.2
        %v767 = vmul.f32 %v639, 0.2
        %v768 = vmul.f32 %v640, 0.2
        %v769 = vmul.f32 %v641, 0.2
        %v770 = vmul.f32 %v642, 0.2
        %v771 = vmul.f32 %v643, 0.2
        %v772 = vmul.f32 %v644, 0.2
        %v773 = vmul.f32 %v645, 0.2
        %v774 = vmul.f32 %v646, 0.2
        %v775 = vmul.f32 %v647, 0.2
        %v776 = vmul.f32 %v648, 0.2
        %v777 = vmul.f32 %v649, 0.2
        %v778 = vmul.f32 %v650, 0.2
        %v779 = vmul.f32 %v651, 0.2
        %v780 = vmul.f32 %v652, 0.2
        %v781 = vmul.f32 %v653, 0.2
        %v782 = vmul.f32 %v654, 0.2
        %v783 = vmul.f32 %v655, 0.2
        %v784 = vmul.f32 %v656, 0.2
        %v785 = vmul.f32 %v657, 0.2
        %v786 = vmul.f32 %v658, 0.2
        %v787 = vmul.f32 %v659, 0.2
        %v788 = vmul.f32 %v660, 0.2
        %v789 = vmul.f32 %v661, 0.2
        %v790 = vmul.f32 %v662, 0.2
        %v791 = vmul.f32 %v663, 0.2
        %v792 = vmul.f32 %v664, 0.2
        %v793 = vmul.f32 %v665, 0.2
        %v794 = vmul.f32 %v666, 0.2
        %v795 = vmul.f32 %v667, 0.2
        %v796 = vmul.f32 %v668, 0.2
        %v797 = vmul.f32 %v669, 0.2
        %v798 = vmul.f32 %v670, 0.2
        %v799 = vmul.f32 %v671, 0.2
        %v800 = vmul.f32 %v672, 0.2
        %v801 = vmul.f32 %v673, 0.2
        %v802 = vmul.f32 %v674, 0.2
        %v803 = vmul.f32 %v675, 0.2
        %v804 = vmul.f32 %v676, 0.2
        %v805 = vmul.f32 %v677, 0.2
        %v806 = vmul.f32 %v678, 0.2
        %v807 = vmul.f32 %v679, 0.2
        %v808 = vmul.f32 %v680, 0.2
        %v809 = vmul.f32 %v681, 0.2
        %v810 = vmul.f32 %v682, 0.2
        %v811 = vmul.f32 %v683, 0.2
        %v812 = vsel %vm684, %v620, %v748
        %v813 = vsel %vm685, %v621, %v749
        %v814 = vsel %vm686, %v622, %v750
        %v815 = vsel %vm687, %v623, %v751
        %v816 = vsel %vm688, %v624, %v752
        %v817 = vsel %vm689, %v625, %v753
        %v818 = vsel %vm690, %v626, %v754
        %v819 = vsel %vm691, %v627, %v755
        %v820 = vsel %vm692, %v628, %v756
        %v821 = vsel %vm693, %v629, %v757
        %v822 = vsel %vm694, %v630, %v758
        %v823 = vsel %vm695, %v631, %v759
        %v824 = vsel %vm696, %v632, %v760
        %v825 = vsel %vm697, %v633, %v761
        %v826 = vsel %vm698, %v634, %v762
        %v827 = vsel %vm699, %v635, %v763
        %v828 = vsel %vm700, %v636, %v764
        %v829 = vsel %vm701, %v637, %v765
        %v830 = vsel %vm702, %v638, %v766
        %v831 = vsel %vm703, %v639, %v767
        %v832 = vsel %vm704, %v640, %v768
        %v833 = vsel %vm705, %v641, %v769
        %v834 = vsel %vm706, %v642, %v770
        %v835 = vsel %vm707, %v643, %v771
        %v836 = vsel %vm708, %v644, %v772
        %v837 = vsel %vm709, %v645, %v773
        %v838 = vsel %vm710, %v646, %v774
        %v839 = vsel %vm711, %v647, %v775
        %v840 = vsel %vm712, %v648, %v776
        %v841 = vsel %vm713, %v649, %v777
        %v842 = vsel %vm714, %v650, %v778
        %v843 = vsel %vm715, %v651, %v779
        %v844 = vsel %vm716, %v652, %v780
        %v845 = vsel %vm717, %v653, %v781
        %v846 = vsel %vm718, %v654, %v782
        %v847 = vsel %vm719, %v655, %v783
        %v848 = vsel %vm720, %v656, %v784
        %v849 = vsel %vm721, %v657, %v785
        %v850 = vsel %vm722, %v658, %v786
        %v851 = vsel %vm723, %v659, %v787
        %v852 = vsel %vm724, %v660, %v788
        %v853 = vsel %vm725, %v661, %v789
        %v854 = vsel %vm726, %v662, %v790
        %v855 = vsel %vm727, %v663, %v791
        %v856 = vsel %vm728, %v664, %v792
        %v857 = vsel %vm729, %v665, %v793
        %v858 = vsel %vm730, %v666, %v794
        %v859 = vsel %vm731, %v667, %v795
        %v860 = vsel %vm732, %v668, %v796
        %v861 = vsel %vm733, %v669, %v797
        %v862 = vsel %vm734, %v670, %v798
        %v863 = vsel %vm735, %v671, %v799
        %v864 = vsel %vm736, %v672, %v800
        %v865 = vsel %vm737, %v673, %v801
        %v866 = vsel %vm738, %v674, %v802
        %v867 = vsel %vm739, %v675, %v803
        %v868 = vsel %vm740, %v676, %v804
        %v869 = vsel %vm741, %v677, %v805
        %v870 = vsel %vm742, %v678, %v806
        %v871 = vsel %vm743, %v679, %v807
        %v872 = vsel %vm744, %v680, %v808
        %v873 = vsel %vm745, %v681, %v809
        %v874 = vsel %vm746, %v682, %v810
        %v875 = vsel %vm747, %v683, %v811
        %v876 = vld [vmem:[#allocation2] sm:$0xff]
        %v877 = vld [vmem:[#allocation2 + $0x8] sm:$0xff]
        %v878 = vld [vmem:[#allocation2 + $0x10] sm:$0xff]
        %v879 = vld [vmem:[#allocation2 + $0x18] sm:$0xff]
        %v880 = vld [vmem:[#allocation2 + $0x20] sm:$0xff]
        %v881 = vld [vmem:[#allocation2 + $0x28] sm:$0xff]
        %v882 = vld [vmem:[#allocation2 + $0x30] sm:$0xff]
        %v883 = vld [vmem:[#allocation2 + $0x38] sm:$0xff]
        %v884 = vld [vmem:[#allocation2 + $0x40] sm:$0xff]
        %v885 = vld [vmem:[#allocation2 + $0x48] sm:$0xff]
        %v886 = vld [vmem:[#allocation2 + $0x50] sm:$0xff]
        %v887 = vld [vmem:[#allocation2 + $0x58] sm:$0xff]
        %v888 = vld [vmem:[#allocation2 + $0x60] sm:$0xff]
        %v889 = vld [vmem:[#allocation2 + $0x68] sm:$0xff]
        %v890 = vld [vmem:[#allocation2 + $0x70] sm:$0xff]
        %v891 = vld [vmem:[#allocation2 + $0x78] sm:$0xff]
        %v892 = vld [vmem:[#allocation2 + $0x80] sm:$0xff]
        %v893 = vld [vmem:[#allocation2 + $0x88] sm:$0xff]
        %v894 = vld [vmem:[#allocation2 + $0x90] sm:$0xff]
        %v895 = vld [vmem:[#allocation2 + $0x98] sm:$0xff]
        %v896 = vld [vmem:[#allocation2 + $0xa0] sm:$0xff]
        %v897 = vld [vmem:[#allocation2 + $0xa8] sm:$0xff]
        %v898 = vld [vmem:[#allocation2 + $0xb0] sm:$0xff]
        %v899 = vld [vmem:[#allocation2 + $0xb8] sm:$0xff]
        %v900 = vld [vmem:[#allocation2 + $0xc0] sm:$0xff]
        %v901 = vld [vmem:[#allocation2 + $0xc8] sm:$0xff]
        %v902 = vld [vmem:[#allocation2 + $0xd0] sm:$0xff]
        %v903 = vld [vmem:[#allocation2 + $0xd8] sm:$0xff]
        %v904 = vld [vmem:[#allocation2 + $0xe0] sm:$0xff]
        %v905 = vld [vmem:[#allocation2 + $0xe8] sm:$0xff]
        %v906 = vld [vmem:[#allocation2 + $0xf0] sm:$0xff]
        %v907 = vld [vmem:[#allocation2 + $0xf8] sm:$0xff]
        %v908 = vld [vmem:[#allocation2 + $0x100] sm:$0xff]
        %v909 = vld [vmem:[#allocation2 + $0x108] sm:$0xff]
        %v910 = vld [vmem:[#allocation2 + $0x110] sm:$0xff]
        %v911 = vld [vmem:[#allocation2 + $0x118] sm:$0xff]
        %v912 = vld [vmem:[#allocation2 + $0x120] sm:$0xff]
        %v913 = vld [vmem:[#allocation2 + $0x128] sm:$0xff]
        %v914 = vld [vmem:[#allocation2 + $0x130] sm:$0xff]
        %v915 = vld [vmem:[#allocation2 + $0x138] sm:$0xff]
        %v916 = vld [vmem:[#allocation2 + $0x140] sm:$0xff]
        %v917 = vld [vmem:[#allocation2 + $0x148] sm:$0xff]
        %v918 = vld [vmem:[#allocation2 + $0x150] sm:$0xff]
        %v919 = vld [vmem:[#allocation2 + $0x158] sm:$0xff]
        %v920 = vld [vmem:[#allocation2 + $0x160] sm:$0xff]
        %v921 = vld [vmem:[#allocation2 + $0x168] sm:$0xff]
        %v922 = vld [vmem:[#allocation2 + $0x170] sm:$0xff]
        %v923 = vld [vmem:[#allocation2 + $0x178] sm:$0xff]
        %v924 = vld [vmem:[#allocation2 + $0x180] sm:$0xff]
        %v925 = vld [vmem:[#allocation2 + $0x188] sm:$0xff]
        %v926 = vld [vmem:[#allocation2 + $0x190] sm:$0xff]
        %v927 = vld [vmem:[#allocation2 + $0x198] sm:$0xff]
        %v928 = vld [vmem:[#allocation2 + $0x1a0] sm:$0xff]
        %v929 = vld [vmem:[#allocation2 + $0x1a8] sm:$0xff]
        %v930 = vld [vmem:[#allocation2 + $0x1b0] sm:$0xff]
        %v931 = vld [vmem:[#allocation2 + $0x1b8] sm:$0xff]
        %v932 = vld [vmem:[#allocation2 + $0x1c0] sm:$0xff]
        %v933 = vld [vmem:[#allocation2 + $0x1c8] sm:$0xff]
        %v934 = vld [vmem:[#allocation2 + $0x1d0] sm:$0xff]
        %v935 = vld [vmem:[#allocation2 + $0x1d8] sm:$0xff]
        %v936 = vld [vmem:[#allocation2 + $0x1e0] sm:$0xff]
        %v937 = vld [vmem:[#allocation2 + $0x1e8] sm:$0xff]
        %v938 = vld [vmem:[#allocation2 + $0x1f0] sm:$0xff]
        %v939 = vld [vmem:[#allocation2 + $0x1f8] sm:$0xff]
        %940 = vset.pattern.permute.xlu0 2
        %941 = vperm.xlu0 %940, %v224
        %v942 = vpop.permute.xlu0 %941
        %944 = vset.pattern.permute.xlu0 2
        %945 = vperm.xlu0 %944, %v225
        %v946 = vpop.permute.xlu0 %945
        %948 = vset.pattern.permute.xlu0 2
        %949 = vperm.xlu0 %948, %v226
        %v950 = vpop.permute.xlu0 %949
        %952 = vset.pattern.permute.xlu0 2
        %953 = vperm.xlu0 %952, %v227
        %v954 = vpop.permute.xlu0 %953
        %956 = vset.pattern.permute.xlu0 2
        %957 = vperm.xlu0 %956, %v228
        %v958 = vpop.permute.xlu0 %957
        %960 = vset.pattern.permute.xlu0 2
        %961 = vperm.xlu0 %960, %v229
        %v962 = vpop.permute.xlu0 %961
        %964 = vset.pattern.permute.xlu0 2
        %965 = vperm.xlu0 %964, %v230
        %v966 = vpop.permute.xlu0 %965
        %968 = vset.pattern.permute.xlu0 2
        %969 = vperm.xlu0 %968, %v231
        %v970 = vpop.permute.xlu0 %969
        %972 = vset.pattern.permute.xlu0 2
        %973 = vperm.xlu0 %972, %v232
        %v974 = vpop.permute.xlu0 %973
        %976 = vset.pattern.permute.xlu0 2
        %977 = vperm.xlu0 %976, %v233
        %v978 = vpop.permute.xlu0 %977
        %980 = vset.pattern.permute.xlu0 2
        %981 = vperm.xlu0 %980, %v234
        %v982 = vpop.permute.xlu0 %981
        %984 = vset.pattern.permute.xlu0 2
        %985 = vperm.xlu0 %984, %v235
        %v986 = vpop.permute.xlu0 %985
        %988 = vset.pattern.permute.xlu0 2
        %989 = vperm.xlu0 %988, %v236
        %v990 = vpop.permute.xlu0 %989
        %992 = vset.pattern.permute.xlu0 2
        %993 = vperm.xlu0 %992, %v237
        %v994 = vpop.permute.xlu0 %993
        %996 = vset.pattern.permute.xlu0 2
        %997 = vperm.xlu0 %996, %v238
        %v998 = vpop.permute.xlu0 %997
        %1000 = vset.pattern.permute.xlu0 2
        %1001 = vperm.xlu0 %1000, %v239
        %v1002 = vpop.permute.xlu0 %1001
        %1004 = vset.pattern.permute.xlu0 2
        %1005 = vperm.xlu0 %1004, %v240
        %v1006 = vpop.permute.xlu0 %1005
        %1008 = vset.pattern.permute.xlu0 2
        %1009 = vperm.xlu0 %1008, %v241
        %v1010 = vpop.permute.xlu0 %1009
        %1012 = vset.pattern.permute.xlu0 2
        %1013 = vperm.xlu0 %1012, %v242
        %v1014 = vpop.permute.xlu0 %1013
        %1016 = vset.pattern.permute.xlu0 2
        %1017 = vperm.xlu0 %1016, %v243
        %v1018 = vpop.permute.xlu0 %1017
        %1020 = vset.pattern.permute.xlu0 2
        %1021 = vperm.xlu0 %1020, %v244
        %v1022 = vpop.permute.xlu0 %1021
        %1024 = vset.pattern.permute.xlu0 2
        %1025 = vperm.xlu0 %1024, %v245
        %v1026 = vpop.permute.xlu0 %1025
        %1028 = vset.pattern.permute.xlu0 2
        %1029 = vperm.xlu0 %1028, %v246
        %v1030 = vpop.permute.xlu0 %1029
        %1032 = vset.pattern.permute.xlu0 2
        %1033 = vperm.xlu0 %1032, %v247
        %v1034 = vpop.permute.xlu0 %1033
        %1036 = vset.pattern.permute.xlu0 2
        %1037 = vperm.xlu0 %1036, %v248
        %v1038 = vpop.permute.xlu0 %1037
        %1040 = vset.pattern.permute.xlu0 2
        %1041 = vperm.xlu0 %1040, %v249
        %v1042 = vpop.permute.xlu0 %1041
        %1044 = vset.pattern.permute.xlu0 2
        %1045 = vperm.xlu0 %1044, %v250
        %v1046 = vpop.permute.xlu0 %1045
        %1048 = vset.pattern.permute.xlu0 2
        %1049 = vperm.xlu0 %1048, %v251
        %v1050 = vpop.permute.xlu0 %1049
        %1052 = vset.pattern.permute.xlu0 2
        %1053 = vperm.xlu0 %1052, %v252
        %v1054 = vpop.permute.xlu0 %1053
        %1056 = vset.pattern.permute.xlu0 2
        %1057 = vperm.xlu0 %1056, %v253
        %v1058 = vpop.permute.xlu0 %1057
        %1060 = vset.pattern.permute.xlu0 2
        %1061 = vperm.xlu0 %1060, %v254
        %v1062 = vpop.permute.xlu0 %1061
        %1064 = vset.pattern.permute.xlu0 2
        %1065 = vperm.xlu0 %1064, %v255
        %v1066 = vpop.permute.xlu0 %1065
        %1068 = vmatprep.subr.mxu0 %v813
        %1069 = vmatpush1.msra.mxu0 %v812
        %1070 = vmatprep.subr.mxu0 %v815
        %1071 = vmatpush1.msra.mxu0 %v814
        %1072 = vmatprep.subr.mxu0 %v817
        %1073 = vmatpush1.msra.mxu0 %v816
        %1074 = vmatprep.subr.mxu0 %v819
        %1075 = vmatpush1.msra.mxu0 %v818
        %1076 = vmatprep.subr.mxu0 %v821
        %1077 = vmatpush1.msra.mxu0 %v820
        %1078 = vmatprep.subr.mxu0 %v823
        %1079 = vmatpush1.msra.mxu0 %v822
        %1080 = vmatprep.subr.mxu0 %v825
        %1081 = vmatpush1.msra.mxu0 %v824
        %1082 = vmatprep.subr.mxu0 %v827
        %1083 = vmatpush1.msra.mxu0 %v826
        %1084 = vmatprep.subr.mxu0 %v829
        %1085 = vmatpush1.msra.mxu0 %v828
        %1086 = vmatprep.subr.mxu0 %v831
        %1087 = vmatpush1.msra.mxu0 %v830
        %1088 = vmatprep.subr.mxu0 %v833
        %1089 = vmatpush1.msra.mxu0 %v832
        %1090 = vmatprep.subr.mxu0 %v835
        %1091 = vmatpush1.msra.mxu0 %v834
        %1092 = vmatprep.subr.mxu0 %v837
        %1093 = vmatpush1.msra.mxu0 %v836
        %1094 = vmatprep.subr.mxu0 %v839
        %1095 = vmatpush1.msra.mxu0 %v838
        %1096 = vmatprep.subr.mxu0 %v841
        %1097 = vmatpush1.msra.mxu0 %v840
        %1098 = vmatprep.subr.mxu0 %v843
        %1099 = vmatpush1.msra.mxu0 %v842
        %1100 = vmatprep.subr.mxu0 %v845
        %1101 = vmatpush1.msra.mxu0 %v844
        %1102 = vmatprep.subr.mxu0 %v847
        %1103 = vmatpush1.msra.mxu0 %v846
        %1104 = vmatprep.subr.mxu0 %v849
        %1105 = vmatpush1.msra.mxu0 %v848
        %1106 = vmatprep.subr.mxu0 %v851
        %1107 = vmatpush1.msra.mxu0 %v850
        %1108 = vmatprep.subr.mxu0 %v853
        %1109 = vmatpush1.msra.mxu0 %v852
        %1110 = vmatprep.subr.mxu0 %v855
        %1111 = vmatpush1.msra.mxu0 %v854
        %1112 = vmatprep.subr.mxu0 %v857
        %1113 = vmatpush1.msra.mxu0 %v856
        %1114 = vmatprep.subr.mxu0 %v859
        %1115 = vmatpush1.msra.mxu0 %v858
        %1116 = vmatprep.subr.mxu0 %v861
        %1117 = vmatpush1.msra.mxu0 %v860
        %1118 = vmatprep.subr.mxu0 %v863
        %1119 = vmatpush1.msra.mxu0 %v862
        %1120 = vmatprep.subr.mxu0 %v865
        %1121 = vmatpush1.msra.mxu0 %v864
        %1122 = vmatprep.subr.mxu0 %v867
        %1123 = vmatpush1.msra.mxu0 %v866
        %1124 = vmatprep.subr.mxu0 %v869
        %1125 = vmatpush1.msra.mxu0 %v868
        %1126 = vmatprep.subr.mxu0 %v871
        %1127 = vmatpush1.msra.mxu0 %v870
        %1128 = vmatprep.subr.mxu0 %v873
        %1129 = vmatpush1.msra.mxu0 %v872
        %1130 = vmatprep.subr.mxu0 %v875
        %1131 = vmatpush1.msra.mxu0 %v874
        %1132 = vmatprep.mubr.f32.mxu0 %v877
        %1133 = vmatmul.mubr.f32.gmra.mrb[0].mxu0 %v876
        %v1134 = vpop.f32.mrb[0].mxu0
        %v1135 = vadd.f32 %v942, %v1134
        %v1136 = vpop.f32.mrb[0].mxu0
        %v1137 = vadd.f32 %v942, %v1136
        %1138 = vmatprep.mubr.f32.mxu0 %v879
        %1139 = vmatmul.mubr.f32.gmra.mrb[0].mxu0 %v878
        %v1140 = vpop.f32.mrb[0].mxu0
        %v1141 = vadd.f32 %v946, %v1140
        %v1142 = vpop.f32.mrb[0].mxu0
        %v1143 = vadd.f32 %v946, %v1142
        %1144 = vmatprep.mubr.f32.mxu0 %v881
        %1145 = vmatmul.mubr.f32.gmra.mrb[0].mxu0 %v880
        %v1146 = vpop.f32.mrb[0].mxu0
        %v1147 = vadd.f32 %v950, %v1146
        %v1148 = vpop.f32.mrb[0].mxu0
        %v1149 = vadd.f32 %v950, %v1148
        %1150 = vmatprep.mubr.f32.mxu0 %v883
        %1151 = vmatmul.mubr.f32.gmra.mrb[0].mxu0 %v882
        %v1152 = vpop.f32.mrb[0].mxu0
        %v1153 = vadd.f32 %v954, %v1152
        %v1154 = vpop.f32.mrb[0].mxu0
        %v1155 = vadd.f32 %v954, %v1154
        %1156 = vmatprep.mubr.f32.mxu0 %v885
        %1157 = vmatmul.mubr.f32.gmra.mrb[0].mxu0 %v884
        %v1158 = vpop.f32.mrb[0].mxu0
        %v1159 = vadd.f32 %v958, %v1158
        %v1160 = vpop.f32.mrb[0].mxu0
        %v1161 = vadd.f32 %v958, %v1160
        %1162 = vmatprep.mubr.f32.mxu0 %v887
        %1163 = vmatmul.mubr.f32.gmra.mrb[0].mxu0 %v886
        %v1164 = vpop.f32.mrb[0].mxu0
        %v1165 = vadd.f32 %v962, %v1164
        %v1166 = vpop.f32.mrb[0].mxu0
        %v1167 = vadd.f32 %v962, %v1166
        %1168 = vmatprep.mubr.f32.mxu0 %v889
        %1169 = vmatmul.mubr.f32.gmra.mrb[0].mxu0 %v888
        %v1170 = vpop.f32.mrb[0].mxu0
        %v1171 = vadd.f32 %v966, %v1170
        %v1172 = vpop.f32.mrb[0].mxu0
        %v1173 = vadd.f32 %v966, %v1172
        %1174 = vmatprep.mubr.f32.mxu0 %v891
        %1175 = vmatmul.mubr.f32.gmra.mrb[0].mxu0 %v890
        %v1176 = vpop.f32.mrb[0].mxu0
        %v1177 = vadd.f32 %v970, %v1176
        %v1178 = vpop.f32.mrb[0].mxu0
        %v1179 = vadd.f32 %v970, %v1178
        %1180 = vmatprep.mubr.f32.mxu0 %v893
        %1181 = vmatmul.mubr.f32.gmra.mrb[0].mxu0 %v892
        %v1182 = vpop.f32.mrb[0].mxu0
        %v1183 = vadd.f32 %v974, %v1182
        %v1184 = vpop.f32.mrb[0].mxu0
        %v1185 = vadd.f32 %v974, %v1184
        %1186 = vmatprep.mubr.f32.mxu0 %v895
        %1187 = vmatmul.mubr.f32.gmra.mrb[0].mxu0 %v894
        %v1188 = vpop.f32.mrb[0].mxu0
        %v1189 = vadd.f32 %v978, %v1188
        %v1190 = vpop.f32.mrb[0].mxu0
        %v1191 = vadd.f32 %v978, %v1190
        %1192 = vmatprep.mubr.f32.mxu0 %v897
        %1193 = vmatmul.mubr.f32.gmra.mrb[0].mxu0 %v896
        %v1194 = vpop.f32.mrb[0].mxu0
        %v1195 = vadd.f32 %v982, %v1194
        %v1196 = vpop.f32.mrb[0].mxu0
        %v1197 = vadd.f32 %v982, %v1196
        %1198 = vmatprep.mubr.f32.mxu0 %v899
        %1199 = vmatmul.mubr.f32.gmra.mrb[0].mxu0 %v898
        %v1200 = vpop.f32.mrb[0].mxu0
        %v1201 = vadd.f32 %v986, %v1200
        %v1202 = vpop.f32.mrb[0].mxu0
        %v1203 = vadd.f32 %v986, %v1202
        %1204 = vmatprep.mubr.f32.mxu0 %v901
        %1205 = vmatmul.mubr.f32.gmra.mrb[0].mxu0 %v900
        %v1206 = vpop.f32.mrb[0].mxu0
        %v1207 = vadd.f32 %v990, %v1206
        %v1208 = vpop.f32.mrb[0].mxu0
        %v1209 = vadd.f32 %v990, %v1208
        %1210 = vmatprep.mubr.f32.mxu0 %v903
        %1211 = vmatmul.mubr.f32.gmra.mrb[0].mxu0 %v902
        %v1212 = vpop.f32.mrb[0].mxu0
        %v1213 = vadd.f32 %v994, %v1212
        %v1214 = vpop.f32.mrb[0].mxu0
        %v1215 = vadd.f32 %v994, %v1214
        %1216 = vmatprep.mubr.f32.mxu0 %v905
        %1217 = vmatmul.mubr.f32.gmra.mrb[0].mxu0 %v904
        %v1218 = vpop.f32.mrb[0].mxu0
        %v1219 = vadd.f32 %v998, %v1218
        %v1220 = vpop.f32.mrb[0].mxu0
        %v1221 = vadd.f32 %v998, %v1220
        %1222 = vmatprep.mubr.f32.mxu0 %v907
        %1223 = vmatmul.mubr.f32.gmra.mrb[0].mxu0 %v906
        %v1224 = vpop.f32.mrb[0].mxu0
        %v1225 = vadd.f32 %v1002, %v1224
        %v1226 = vpop.f32.mrb[0].mxu0
        %v1227 = vadd.f32 %v1002, %v1226
        %1228 = vmatprep.mubr.f32.mxu0 %v909
        %1229 = vmatmul.mubr.f32.gmra.mrb[0].mxu0 %v908
        %v1230 = vpop.f32.mrb[0].mxu0
        %v1231 = vadd.f32 %v1006, %v1230
        %v1232 = vpop.f32.mrb[0].mxu0
        %v1233 = vadd.f32 %v1006, %v1232
        %1234 = vmatprep.mubr.f32.mxu0 %v911
        %1235 = vmatmul.mubr.f32.gmra.mrb[0].mxu0 %v910
        %v1236 = vpop.f32.mrb[0].mxu0
        %v1237 = vadd.f32 %v1010, %v1236
        %v1238 = vpop.f32.mrb[0].mxu0
        %v1239 = vadd.f32 %v1010, %v1238
        %1240 = vmatprep.mubr.f32.mxu0 %v913
        %1241 = vmatmul.mubr.f32.gmra.mrb[0].mxu0 %v912
        %v1242 = vpop.f32.mrb[0].mxu0
        %v1243 = vadd.f32 %v1014, %v1242
        %v1244 = vpop.f32.mrb[0].mxu0
        %v1245 = vadd.f32 %v1014, %v1244
        %1246 = vmatprep.mubr.f32.mxu0 %v915
        %1247 = vmatmul.mubr.f32.gmra.mrb[0].mxu0 %v914
        %v1248 = vpop.f32.mrb[0].mxu0
        %v1249 = vadd.f32 %v1018, %v1248
        %v1250 = vpop.f32.mrb[0].mxu0
        %v1251 = vadd.f32 %v1018, %v1250
        %1252 = vmatprep.mubr.f32.mxu0 %v917
        %1253 = vmatmul.mubr.f32.gmra.mrb[0].mxu0 %v916
        %v1254 = vpop.f32.mrb[0].mxu0
        %v1255 = vadd.f32 %v1022, %v1254
        %v1256 = vpop.f32.mrb[0].mxu0
        %v1257 = vadd.f32 %v1022, %v1256
        %1258 = vmatprep.mubr.f32.mxu0 %v919
        %1259 = vmatmul.mubr.f32.gmra.mrb[0].mxu0 %v918
        %v1260 = vpop.f32.mrb[0].mxu0
        %v1261 = vadd.f32 %v1026, %v1260
        %v1262 = vpop.f32.mrb[0].mxu0
        %v1263 = vadd.f32 %v1026, %v1262
        %1264 = vmatprep.mubr.f32.mxu0 %v921
        %1265 = vmatmul.mubr.f32.gmra.mrb[0].mxu0 %v920
        %v1266 = vpop.f32.mrb[0].mxu0
        %v1267 = vadd.f32 %v1030, %v1266
        %v1268 = vpop.f32.mrb[0].mxu0
        %v1269 = vadd.f32 %v1030, %v1268
        %1270 = vmatprep.mubr.f32.mxu0 %v923
        %1271 = vmatmul.mubr.f32.gmra.mrb[0].mxu0 %v922
        %v1272 = vpop.f32.mrb[0].mxu0
        %v1273 = vadd.f32 %v1034, %v1272
        %v1274 = vpop.f32.mrb[0].mxu0
        %v1275 = vadd.f32 %v1034, %v1274
        %1276 = vmatprep.mubr.f32.mxu0 %v925
        %1277 = vmatmul.mubr.f32.gmra.mrb[0].mxu0 %v924
        %v1278 = vpop.f32.mrb[0].mxu0
        %v1279 = vadd.f32 %v1038, %v1278
        %v1280 = vpop.f32.mrb[0].mxu0
        %v1281 = vadd.f32 %v1038, %v1280
        %1282 = vmatprep.mubr.f32.mxu0 %v927
        %1283 = vmatmul.mubr.f32.gmra.mrb[0].mxu0 %v926
        %v1284 = vpop.f32.mrb[0].mxu0
        %v1285 = vadd.f32 %v1042, %v1284
        %v1286 = vpop.f32.mrb[0].mxu0
        %v1287 = vadd.f32 %v1042, %v1286
        %1288 = vmatprep.mubr.f32.mxu0 %v929
        %1289 = vmatmul.mubr.f32.gmra.mrb[0].mxu0 %v928
        %v1290 = vpop.f32.mrb[0].mxu0
        %v1291 = vadd.f32 %v1046, %v1290
        %v1292 = vpop.f32.mrb[0].mxu0
        %v1293 = vadd.f32 %v1046, %v1292
        %1294 = vmatprep.mubr.f32.mxu0 %v931
        %1295 = vmatmul.mubr.f32.gmra.mrb[0].mxu0 %v930
        %v1296 = vpop.f32.mrb[0].mxu0
        %v1297 = vadd.f32 %v1050, %v1296
        %v1298 = vpop.f32.mrb[0].mxu0
        %v1299 = vadd.f32 %v1050, %v1298
        %1300 = vmatprep.mubr.f32.mxu0 %v933
        %1301 = vmatmul.mubr.f32.gmra.mrb[0].mxu0 %v932
        %v1302 = vpop.f32.mrb[0].mxu0
        %v1303 = vadd.f32 %v1054, %v1302
        %v1304 = vpop.f32.mrb[0].mxu0
        %v1305 = vadd.f32 %v1054, %v1304
        %1306 = vmatprep.mubr.f32.mxu0 %v935
        %1307 = vmatmul.mubr.f32.gmra.mrb[0].mxu0 %v934
        %v1308 = vpop.f32.mrb[0].mxu0
        %v1309 = vadd.f32 %v1058, %v1308
        %v1310 = vpop.f32.mrb[0].mxu0
        %v1311 = vadd.f32 %v1058, %v1310
        %1312 = vmatprep.mubr.f32.mxu0 %v937
        %1313 = vmatmul.mubr.f32.gmra.mrb[0].mxu0 %v936
        %v1314 = vpop.f32.mrb[0].mxu0
        %v1315 = vadd.f32 %v1062, %v1314
        %v1316 = vpop.f32.mrb[0].mxu0
        %v1317 = vadd.f32 %v1062, %v1316
        %1318 = vmatprep.mubr.f32.mxu0 %v939
        %1319 = vmatmul.mubr.f32.gmra.mrb[0].mxu0 %v938
        %v1320 = vpop.f32.mrb[0].mxu0
        %v1321 = vadd.f32 %v1066, %v1320
        %v1322 = vpop.f32.mrb[0].mxu0
        %v1323 = vadd.f32 %v1066, %v1322
        %1324 = vdwg.mxu0
        %vm1325 = vcmp.gt.f32.partialorder %v1135, 0.0
        %vm1326 = vcmp.gt.f32.partialorder %v1137, 0.0
        %vm1327 = vcmp.gt.f32.partialorder %v1141, 0.0
        %vm1328 = vcmp.gt.f32.partialorder %v1143, 0.0
        %vm1329 = vcmp.gt.f32.partialorder %v1147, 0.0
        %vm1330 = vcmp.gt.f32.partialorder %v1149, 0.0
        %vm1331 = vcmp.gt.f32.partialorder %v1153, 0.0
        %vm1332 = vcmp.gt.f32.partialorder %v1155, 0.0
        %vm1333 = vcmp.gt.f32.partialorder %v1159, 0.0
        %vm1334 = vcmp.gt.f32.partialorder %v1161, 0.0
        %vm1335 = vcmp.gt.f32.partialorder %v1165, 0.0
        %vm1336 = vcmp.gt.f32.partialorder %v1167, 0.0
        %vm1337 = vcmp.gt.f32.partialorder %v1171, 0.0
        %vm1338 = vcmp.gt.f32.partialorder %v1173, 0.0
        %vm1339 = vcmp.gt.f32.partialorder %v1177, 0.0
        %vm1340 = vcmp.gt.f32.partialorder %v1179, 0.0
        %vm1341 = vcmp.gt.f32.partialorder %v1183, 0.0
        %vm1342 = vcmp.gt.f32.partialorder %v1185, 0.0
        %vm1343 = vcmp.gt.f32.partialorder %v1189, 0.0
        %vm1344 = vcmp.gt.f32.partialorder %v1191, 0.0
        %vm1345 = vcmp.gt.f32.partialorder %v1195, 0.0
        %vm1346 = vcmp.gt.f32.partialorder %v1197, 0.0
        %vm1347 = vcmp.gt.f32.partialorder %v1201, 0.0
        %vm1348 = vcmp.gt.f32.partialorder %v1203, 0.0
        %vm1349 = vcmp.gt.f32.partialorder %v1207, 0.0
        %vm1350 = vcmp.gt.f32.partialorder %v1209, 0.0
        %vm1351 = vcmp.gt.f32.partialorder %v1213, 0.0
        %vm1352 = vcmp.gt.f32.partialorder %v1215, 0.0
        %vm1353 = vcmp.gt.f32.partialorder %v1219, 0.0
        %vm1354 = vcmp.gt.f32.partialorder %v1221, 0.0
        %vm1355 = vcmp.gt.f32.partialorder %v1225, 0.0
        %vm1356 = vcmp.gt.f32.partialorder %v1227, 0.0
        %vm1357 = vcmp.gt.f32.partialorder %v1231, 0.0
        %vm1358 = vcmp.gt.f32.partialorder %v1233, 0.0
        %vm1359 = vcmp.gt.f32.partialorder %v1237, 0.0
        %vm1360 = vcmp.gt.f32.partialorder %v1239, 0.0
        %vm1361 = vcmp.gt.f32.partialorder %v1243, 0.0
        %vm1362 = vcmp.gt.f32.partialorder %v1245, 0.0
        %vm1363 = vcmp.gt.f32.partialorder %v1249, 0.0
        %vm1364 = vcmp.gt.f32.partialorder %v1251, 0.0
        %vm1365 = vcmp.gt.f32.partialorder %v1255, 0.0
        %vm1366 = vcmp.gt.f32.partialorder %v1257, 0.0
        %vm1367 = vcmp.gt.f32.partialorder %v1261, 0.0
        %vm1368 = vcmp.gt.f32.partialorder %v1263, 0.0
        %vm1369 = vcmp.gt.f32.partialorder %v1267, 0.0
        %vm1370 = vcmp.gt.f32.partialorder %v1269, 0.0
        %vm1371 = vcmp.gt.f32.partialorder %v1273, 0.0
        %vm1372 = vcmp.gt.f32.partialorder %v1275, 0.0
        %vm1373 = vcmp.gt.f32.partialorder %v1279, 0.0
        %vm1374 = vcmp.gt.f32.partialorder %v1281, 0.0
        %vm1375 = vcmp.gt.f32.partialorder %v1285, 0.0
        %vm1376 = vcmp.gt.f32.partialorder %v1287, 0.0
        %vm1377 = vcmp.gt.f32.partialorder %v1291, 0.0
        %vm1378 = vcmp.gt.f32.partialorder %v1293, 0.0
        %vm1379 = vcmp.gt.f32.partialorder %v1297, 0.0
        %vm1380 = vcmp.gt.f32.partialorder %v1299, 0.0
        %vm1381 = vcmp.gt.f32.partialorder %v1303, 0.0
        %vm1382 = vcmp.gt.f32.partialorder %v1305, 0.0
        %vm1383 = vcmp.gt.f32.partialorder %v1309, 0.0
        %vm1384 = vcmp.gt.f32.partialorder %v1311, 0.0
        %vm1385 = vcmp.gt.f32.partialorder %v1315, 0.0
        %vm1386 = vcmp.gt.f32.partialorder %v1317, 0.0
        %vm1387 = vcmp.gt.f32.partialorder %v1321, 0.0
        %vm1388 = vcmp.gt.f32.partialorder %v1323, 0.0
        %v1389 = vmul.f32 %v1135, 0.2
        %v1390 = vmul.f32 %v1137, 0.2
        %v1391 = vmul.f32 %v1141, 0.2
        %v1392 = vmul.f32 %v1143, 0.2
        %v1393 = vmul.f32 %v1147, 0.2
        %v1394 = vmul.f32 %v1149, 0.2
        %v1395 = vmul.f32 %v1153, 0.2
        %v1396 = vmul.f32 %v1155, 0.2
        %v1397 = vmul.f32 %v1159, 0.2
        %v1398 = vmul.f32 %v1161, 0.2
        %v1399 = vmul.f32 %v1165, 0.2
        %v1400 = vmul.f32 %v1167, 0.2
        %v1401 = vmul.f32 %v1171, 0.2
        %v1402 = vmul.f32 %v1173, 0.2
        %v1403 = vmul.f32 %v1177, 0.2
        %v1404 = vmul.f32 %v1179, 0.2
        %v1405 = vmul.f32 %v1183, 0.2
        %v1406 = vmul.f32 %v1185, 0.2
        %v1407 = vmul.f32 %v1189, 0.2
        %v1408 = vmul.f32 %v1191, 0.2
        %v1409 = vmul.f32 %v1195, 0.2
        %v1410 = vmul.f32 %v1197, 0.2
        %v1411 = vmul.f32 %v1201, 0.2
        %v1412 = vmul.f32 %v1203, 0.2
        %v1413 = vmul.f32 %v1207, 0.2
        %v1414 = vmul.f32 %v1209, 0.2
        %v1415 = vmul.f32 %v1213, 0.2
        %v1416 = vmul.f32 %v1215, 0.2
        %v1417 = vmul.f32 %v1219, 0.2
        %v1418 = vmul.f32 %v1221, 0.2
        %v1419 = vmul.f32 %v1225, 0.2
        %v1420 = vmul.f32 %v1227, 0.2
        %v1421 = vmul.f32 %v1231, 0.2
        %v1422 = vmul.f32 %v1233, 0.2
        %v1423 = vmul.f32 %v1237, 0.2
        %v1424 = vmul.f32 %v1239, 0.2
        %v1425 = vmul.f32 %v1243, 0.2
        %v1426 = vmul.f32 %v1245, 0.2
        %v1427 = vmul.f32 %v1249, 0.2
        %v1428 = vmul.f32 %v1251, 0.2
        %v1429 = vmul.f32 %v1255, 0.2
        %v1430 = vmul.f32 %v1257, 0.2
        %v1431 = vmul.f32 %v1261, 0.2
        %v1432 = vmul.f32 %v1263, 0.2
        %v1433 = vmul.f32 %v1267, 0.2
        %v1434 = vmul.f32 %v1269, 0.2
        %v1435 = vmul.f32 %v1273, 0.2
        %v1436 = vmul.f32 %v1275, 0.2
        %v1437 = vmul.f32 %v1279, 0.2
        %v1438 = vmul.f32 %v1281, 0.2
        %v1439 = vmul.f32 %v1285, 0.2
        %v1440 = vmul.f32 %v1287, 0.2
        %v1441 = vmul.f32 %v1291, 0.2
        %v1442 = vmul.f32 %v1293, 0.2
        %v1443 = vmul.f32 %v1297, 0.2
        %v1444 = vmul.f32 %v1299, 0.2
        %v1445 = vmul.f32 %v1303, 0.2
        %v1446 = vmul.f32 %v1305, 0.2
        %v1447 = vmul.f32 %v1309, 0.2
        %v1448 = vmul.f32 %v1311, 0.2
        %v1449 = vmul.f32 %v1315, 0.2
        %v1450 = vmul.f32 %v1317, 0.2
        %v1451 = vmul.f32 %v1321, 0.2
        %v1452 = vmul.f32 %v1323, 0.2
        %v1453 = vsel %vm1325, %v1135, %v1389
        %v1454 = vsel %vm1326, %v1137, %v1390
        %v1455 = vsel %vm1327, %v1141, %v1391
        %v1456 = vsel %vm1328, %v1143, %v1392
        %v1457 = vsel %vm1329, %v1147, %v1393
        %v1458 = vsel %vm1330, %v1149, %v1394
        %v1459 = vsel %vm1331, %v1153, %v1395
        %v1460 = vsel %vm1332, %v1155, %v1396
        %v1461 = vsel %vm1333, %v1159, %v1397
        %v1462 = vsel %vm1334, %v1161, %v1398
        %v1463 = vsel %vm1335, %v1165, %v1399
        %v1464 = vsel %vm1336, %v1167, %v1400
        %v1465 = vsel %vm1337, %v1171, %v1401
        %v1466 = vsel %vm1338, %v1173, %v1402
        %v1467 = vsel %vm1339, %v1177, %v1403
        %v1468 = vsel %vm1340, %v1179, %v1404
        %v1469 = vsel %vm1341, %v1183, %v1405
        %v1470 = vsel %vm1342, %v1185, %v1406
        %v1471 = vsel %vm1343, %v1189, %v1407
        %v1472 = vsel %vm1344, %v1191, %v1408
        %v1473 = vsel %vm1345, %v1195, %v1409
        %v1474 = vsel %vm1346, %v1197, %v1410
        %v1475 = vsel %vm1347, %v1201, %v1411
        %v1476 = vsel %vm1348, %v1203, %v1412
        %v1477 = vsel %vm1349, %v1207, %v1413
        %v1478 = vsel %vm1350, %v1209, %v1414
        %v1479 = vsel %vm1351, %v1213, %v1415
        %v1480 = vsel %vm1352, %v1215, %v1416
        %v1481 = vsel %vm1353, %v1219, %v1417
        %v1482 = vsel %vm1354, %v1221, %v1418
        %v1483 = vsel %vm1355, %v1225, %v1419
        %v1484 = vsel %vm1356, %v1227, %v1420
        %v1485 = vsel %vm1357, %v1231, %v1421
        %v1486 = vsel %vm1358, %v1233, %v1422
        %v1487 = vsel %vm1359, %v1237, %v1423
        %v1488 = vsel %vm1360, %v1239, %v1424
        %v1489 = vsel %vm1361, %v1243, %v1425
        %v1490 = vsel %vm1362, %v1245, %v1426
        %v1491 = vsel %vm1363, %v1249, %v1427
        %v1492 = vsel %vm1364, %v1251, %v1428
        %v1493 = vsel %vm1365, %v1255, %v1429
        %v1494 = vsel %vm1366, %v1257, %v1430
        %v1495 = vsel %vm1367, %v1261, %v1431
        %v1496 = vsel %vm1368, %v1263, %v1432
        %v1497 = vsel %vm1369, %v1267, %v1433
        %v1498 = vsel %vm1370, %v1269, %v1434
        %v1499 = vsel %vm1371, %v1273, %v1435
        %v1500 = vsel %vm1372, %v1275, %v1436
        %v1501 = vsel %vm1373, %v1279, %v1437
        %v1502 = vsel %vm1374, %v1281, %v1438
        %v1503 = vsel %vm1375, %v1285, %v1439
        %v1504 = vsel %vm1376, %v1287, %v1440
        %v1505 = vsel %vm1377, %v1291, %v1441
        %v1506 = vsel %vm1378, %v1293, %v1442
        %v1507 = vsel %vm1379, %v1297, %v1443
        %v1508 = vsel %vm1380, %v1299, %v1444
        %v1509 = vsel %vm1381, %v1303, %v1445
        %v1510 = vsel %vm1382, %v1305, %v1446
        %v1511 = vsel %vm1383, %v1309, %v1447
        %v1512 = vsel %vm1384, %v1311, %v1448
        %v1513 = vsel %vm1385, %v1315, %v1449
        %v1514 = vsel %vm1386, %v1317, %v1450
        %v1515 = vsel %vm1387, %v1321, %v1451
        %v1516 = vsel %vm1388, %v1323, %v1452
        %v1517 = vld [vmem:[#allocation5] sm:$0xff]
        %v1518 = vld [vmem:[#allocation5 + $0x8] sm:$0xff]
        %v1519 = vld [vmem:[#allocation5 + $0x10] sm:$0xff]
        %v1520 = vld [vmem:[#allocation5 + $0x18] sm:$0xff]
        %v1521 = vld [vmem:[#allocation5 + $0x20] sm:$0xff]
        %v1522 = vld [vmem:[#allocation5 + $0x28] sm:$0xff]
        %v1523 = vld [vmem:[#allocation5 + $0x30] sm:$0xff]
        %v1524 = vld [vmem:[#allocation5 + $0x38] sm:$0xff]
        %v1525 = vld [vmem:[#allocation5 + $0x40] sm:$0xff]
        %v1526 = vld [vmem:[#allocation5 + $0x48] sm:$0xff]
        %v1527 = vld [vmem:[#allocation5 + $0x50] sm:$0xff]
        %v1528 = vld [vmem:[#allocation5 + $0x58] sm:$0xff]
        %v1529 = vld [vmem:[#allocation5 + $0x60] sm:$0xff]
        %v1530 = vld [vmem:[#allocation5 + $0x68] sm:$0xff]
        %v1531 = vld [vmem:[#allocation5 + $0x70] sm:$0xff]
        %v1532 = vld [vmem:[#allocation5 + $0x78] sm:$0xff]
        %v1533 = vld [vmem:[#allocation5 + $0x80] sm:$0xff]
        %v1534 = vld [vmem:[#allocation5 + $0x88] sm:$0xff]
        %v1535 = vld [vmem:[#allocation5 + $0x90] sm:$0xff]
        %v1536 = vld [vmem:[#allocation5 + $0x98] sm:$0xff]
        %v1537 = vld [vmem:[#allocation5 + $0xa0] sm:$0xff]
        %v1538 = vld [vmem:[#allocation5 + $0xa8] sm:$0xff]
        %v1539 = vld [vmem:[#allocation5 + $0xb0] sm:$0xff]
        %v1540 = vld [vmem:[#allocation5 + $0xb8] sm:$0xff]
        %v1541 = vld [vmem:[#allocation5 + $0xc0] sm:$0xff]
        %v1542 = vld [vmem:[#allocation5 + $0xc8] sm:$0xff]
        %v1543 = vld [vmem:[#allocation5 + $0xd0] sm:$0xff]
        %v1544 = vld [vmem:[#allocation5 + $0xd8] sm:$0xff]
        %v1545 = vld [vmem:[#allocation5 + $0xe0] sm:$0xff]
        %v1546 = vld [vmem:[#allocation5 + $0xe8] sm:$0xff]
        %v1547 = vld [vmem:[#allocation5 + $0xf0] sm:$0xff]
        %v1548 = vld [vmem:[#allocation5 + $0xf8] sm:$0xff]
        %v1549 = vld [vmem:[#allocation5 + $0x100] sm:$0xff]
        %v1550 = vld [vmem:[#allocation5 + $0x108] sm:$0xff]
        %v1551 = vld [vmem:[#allocation5 + $0x110] sm:$0xff]
        %v1552 = vld [vmem:[#allocation5 + $0x118] sm:$0xff]
        %v1553 = vld [vmem:[#allocation5 + $0x120] sm:$0xff]
        %v1554 = vld [vmem:[#allocation5 + $0x128] sm:$0xff]
        %v1555 = vld [vmem:[#allocation5 + $0x130] sm:$0xff]
        %v1556 = vld [vmem:[#allocation5 + $0x138] sm:$0xff]
        %v1557 = vld [vmem:[#allocation5 + $0x140] sm:$0xff]
        %v1558 = vld [vmem:[#allocation5 + $0x148] sm:$0xff]
        %v1559 = vld [vmem:[#allocation5 + $0x150] sm:$0xff]
        %v1560 = vld [vmem:[#allocation5 + $0x158] sm:$0xff]
        %v1561 = vld [vmem:[#allocation5 + $0x160] sm:$0xff]
        %v1562 = vld [vmem:[#allocation5 + $0x168] sm:$0xff]
        %v1563 = vld [vmem:[#allocation5 + $0x170] sm:$0xff]
        %v1564 = vld [vmem:[#allocation5 + $0x178] sm:$0xff]
        %v1565 = vld [vmem:[#allocation5 + $0x180] sm:$0xff]
        %v1566 = vld [vmem:[#allocation5 + $0x188] sm:$0xff]
        %v1567 = vld [vmem:[#allocation5 + $0x190] sm:$0xff]
        %v1568 = vld [vmem:[#allocation5 + $0x198] sm:$0xff]
        %v1569 = vld [vmem:[#allocation5 + $0x1a0] sm:$0xff]
        %v1570 = vld [vmem:[#allocation5 + $0x1a8] sm:$0xff]
        %v1571 = vld [vmem:[#allocation5 + $0x1b0] sm:$0xff]
        %v1572 = vld [vmem:[#allocation5 + $0x1b8] sm:$0xff]
        %v1573 = vld [vmem:[#allocation5 + $0x1c0] sm:$0xff]
        %v1574 = vld [vmem:[#allocation5 + $0x1c8] sm:$0xff]
        %v1575 = vld [vmem:[#allocation5 + $0x1d0] sm:$0xff]
        %v1576 = vld [vmem:[#allocation5 + $0x1d8] sm:$0xff]
        %v1577 = vld [vmem:[#allocation5 + $0x1e0] sm:$0xff]
        %v1578 = vld [vmem:[#allocation5 + $0x1e8] sm:$0xff]
        %v1579 = vld [vmem:[#allocation5 + $0x1f0] sm:$0xff]
        %v1580 = vld [vmem:[#allocation5 + $0x1f8] sm:$0xff]
        %1581 = vset.pattern.permute.xlu0 3
        %1582 = vperm.xlu0 %1581, %v224
        %v1583 = vpop.permute.xlu0 %1582
        %1585 = vset.pattern.permute.xlu0 3
        %1586 = vperm.xlu0 %1585, %v225
        %v1587 = vpop.permute.xlu0 %1586
        %1589 = vset.pattern.permute.xlu0 3
        %1590 = vperm.xlu0 %1589, %v226
        %v1591 = vpop.permute.xlu0 %1590
        %1593 = vset.pattern.permute.xlu0 3
        %1594 = vperm.xlu0 %1593, %v227
        %v1595 = vpop.permute.xlu0 %1594
        %1597 = vset.pattern.permute.xlu0 3
        %1598 = vperm.xlu0 %1597, %v228
        %v1599 = vpop.permute.xlu0 %1598
        %1601 = vset.pattern.permute.xlu0 3
        %1602 = vperm.xlu0 %1601, %v229
        %v1603 = vpop.permute.xlu0 %1602
        %1605 = vset.pattern.permute.xlu0 3
        %1606 = vperm.xlu0 %1605, %v230
        %v1607 = vpop.permute.xlu0 %1606
        %1609 = vset.pattern.permute.xlu0 3
        %1610 = vperm.xlu0 %1609, %v231
        %v1611 = vpop.permute.xlu0 %1610
        %1613 = vset.pattern.permute.xlu0 3
        %1614 = vperm.xlu0 %1613, %v232
        %v1615 = vpop.permute.xlu0 %1614
        %1617 = vset.pattern.permute.xlu0 3
        %1618 = vperm.xlu0 %1617, %v233
        %v1619 = vpop.permute.xlu0 %1618
        %1621 = vset.pattern.permute.xlu0 3
        %1622 = vperm.xlu0 %1621, %v234
        %v1623 = vpop.permute.xlu0 %1622
        %1625 = vset.pattern.permute.xlu0 3
        %1626 = vperm.xlu0 %1625, %v235
        %v1627 = vpop.permute.xlu0 %1626
        %1629 = vset.pattern.permute.xlu0 3
        %1630 = vperm.xlu0 %1629, %v236
        %v1631 = vpop.permute.xlu0 %1630
        %1633 = vset.pattern.permute.xlu0 3
        %1634 = vperm.xlu0 %1633, %v237
        %v1635 = vpop.permute.xlu0 %1634
        %1637 = vset.pattern.permute.xlu0 3
        %1638 = vperm.xlu0 %1637, %v238
        %v1639 = vpop.permute.xlu0 %1638
        %1641 = vset.pattern.permute.xlu0 3
        %1642 = vperm.xlu0 %1641, %v239
        %v1643 = vpop.permute.xlu0 %1642
        %1645 = vset.pattern.permute.xlu0 3
        %1646 = vperm.xlu0 %1645, %v240
        %v1647 = vpop.permute.xlu0 %1646
        %1649 = vset.pattern.permute.xlu0 3
        %1650 = vperm.xlu0 %1649, %v241
        %v1651 = vpop.permute.xlu0 %1650
        %1653 = vset.pattern.permute.xlu0 3
        %1654 = vperm.xlu0 %1653, %v242
        %v1655 = vpop.permute.xlu0 %1654
        %1657 = vset.pattern.permute.xlu0 3
        %1658 = vperm.xlu0 %1657, %v243
        %v1659 = vpop.permute.xlu0 %1658
        %1661 = vset.pattern.permute.xlu0 3
        %1662 = vperm.xlu0 %1661, %v244
        %v1663 = vpop.permute.xlu0 %1662
        %1665 = vset.pattern.permute.xlu0 3
        %1666 = vperm.xlu0 %1665, %v245
        %v1667 = vpop.permute.xlu0 %1666
        %1669 = vset.pattern.permute.xlu0 3
        %1670 = vperm.xlu0 %1669, %v246
        %v1671 = vpop.permute.xlu0 %1670
        %1673 = vset.pattern.permute.xlu0 3
        %1674 = vperm.xlu0 %1673, %v247
        %v1675 = vpop.permute.xlu0 %1674
        %1677 = vset.pattern.permute.xlu0 3
        %1678 = vperm.xlu0 %1677, %v248
        %v1679 = vpop.permute.xlu0 %1678
        %1681 = vset.pattern.permute.xlu0 3
        %1682 = vperm.xlu0 %1681, %v249
        %v1683 = vpop.permute.xlu0 %1682
        %1685 = vset.pattern.permute.xlu0 3
        %1686 = vperm.xlu0 %1685, %v250
        %v1687 = vpop.permute.xlu0 %1686
        %1689 = vset.pattern.permute.xlu0 3
        %1690 = vperm.xlu0 %1689, %v251
        %v1691 = vpop.permute.xlu0 %1690
        %1693 = vset.pattern.permute.xlu0 3
        %1694 = vperm.xlu0 %1693, %v252
        %v1695 = vpop.permute.xlu0 %1694
        %1697 = vset.pattern.permute.xlu0 3
        %1698 = vperm.xlu0 %1697, %v253
        %v1699 = vpop.permute.xlu0 %1698
        %1701 = vset.pattern.permute.xlu0 3
        %1702 = vperm.xlu0 %1701, %v254
        %v1703 = vpop.permute.xlu0 %1702
        %1705 = vset.pattern.permute.xlu0 3
        %1706 = vperm.xlu0 %1705, %v255
        %v1707 = vpop.permute.xlu0 %1706
        %1709 = vmatprep.subr.mxu0 %v1454
        %1710 = vmatpush1.msra.mxu0 %v1453
        %1711 = vmatprep.subr.mxu0 %v1456
        %1712 = vmatpush1.msra.mxu0 %v1455
        %1713 = vmatprep.subr.mxu0 %v1458
        %1714 = vmatpush1.msra.mxu0 %v1457
        %1715 = vmatprep.subr.mxu0 %v1460
        %1716 = vmatpush1.msra.mxu0 %v1459
        %1717 = vmatprep.subr.mxu0 %v1462
        %1718 = vmatpush1.msra.mxu0 %v1461
        %1719 = vmatprep.subr.mxu0 %v1464
        %1720 = vmatpush1.msra.mxu0 %v1463
        %1721 = vmatprep.subr.mxu0 %v1466
        %1722 = vmatpush1.msra.mxu0 %v1465
        %1723 = vmatprep.subr.mxu0 %v1468
        %1724 = vmatpush1.msra.mxu0 %v1467
        %1725 = vmatprep.subr.mxu0 %v1470
        %1726 = vmatpush1.msra.mxu0 %v1469
        %1727 = vmatprep.subr.mxu0 %v1472
        %1728 = vmatpush1.msra.mxu0 %v1471
        %1729 = vmatprep.subr.mxu0 %v1474
        %1730 = vmatpush1.msra.mxu0 %v1473
        %1731 = vmatprep.subr.mxu0 %v1476
        %1732 = vmatpush1.msra.mxu0 %v1475
        %1733 = vmatprep.subr.mxu0 %v1478
        %1734 = vmatpush1.msra.mxu0 %v1477
        %1735 = vmatprep.subr.mxu0 %v1480
        %1736 = vmatpush1.msra.mxu0 %v1479
        %1737 = vmatprep.subr.mxu0 %v1482
        %1738 = vmatpush1.msra.mxu0 %v1481
        %1739 = vmatprep.subr.mxu0 %v1484
        %1740 = vmatpush1.msra.mxu0 %v1483
        %1741 = vmatprep.subr.mxu0 %v1486
        %1742 = vmatpush1.msra.mxu0 %v1485
        %1743 = vmatprep.subr.mxu0 %v1488
        %1744 = vmatpush1.msra.mxu0 %v1487
        %1745 = vmatprep.subr.mxu0 %v1490
        %1746 = vmatpush1.msra.mxu0 %v1489
        %1747 = vmatprep.subr.mxu0 %v1492
        %1748 = vmatpush1.msra.mxu0 %v1491
        %1749 = vmatprep.subr.mxu0 %v1494
        %1750 = vmatpush1.msra.mxu0 %v1493
        %1751 = vmatprep.subr.mxu0 %v1496
        %1752 = vmatpush1.msra.mxu0 %v1495
        %1753 = vmatprep.subr.mxu0 %v1498
        %1754 = vmatpush1.msra.mxu0 %v1497
        %1755 = vmatprep.subr.mxu0 %v1500
        %1756 = vmatpush1.msra.mxu0 %v1499
        %1757 = vmatprep.subr.mxu0 %v1502
        %1758 = vmatpush1.msra.mxu0 %v1501
        %1759 = vmatprep.subr.mxu0 %v1504
        %1760 = vmatpush1.msra.mxu0 %v1503
        %1761 = vmatprep.subr.mxu0 %v1506
        %1762 = vmatpush1.msra.mxu0 %v1505
        %1763 = vmatprep.subr.mxu0 %v1508
        %1764 = vmatpush1.msra.mxu0 %v1507
        %1765 = vmatprep.subr.mxu0 %v1510
        %1766 = vmatpush1.msra.mxu0 %v1509
        %1767 = vmatprep.subr.mxu0 %v1512
        %1768 = vmatpush1.msra.mxu0 %v1511
        %1769 = vmatprep.subr.mxu0 %v1514
        %1770 = vmatpush1.msra.mxu0 %v1513
        %1771 = vmatprep.subr.mxu0 %v1516
        %1772 = vmatpush1.msra.mxu0 %v1515
        %1773 = vmatprep.mubr.f32.mxu0 %v1518
        %1774 = vmatmul.mubr.f32.gmra.mrb[0].mxu0 %v1517
        %v1775 = vpop.f32.mrb[0].mxu0
        %v1776 = vadd.f32 %v1583, %v1775
        %v1777 = vpop.f32.mrb[0].mxu0
        %v1778 = vadd.f32 %v1583, %v1777
        %1779 = vmatprep.mubr.f32.mxu0 %v1520
        %1780 = vmatmul.mubr.f32.gmra.mrb[0].mxu0 %v1519
        %v1781 = vpop.f32.mrb[0].mxu0
        %v1782 = vadd.f32 %v1587, %v1781
        %v1783 = vpop.f32.mrb[0].mxu0
        %v1784 = vadd.f32 %v1587, %v1783
        %1785 = vmatprep.mubr.f32.mxu0 %v1522
        %1786 = vmatmul.mubr.f32.gmra.mrb[0].mxu0 %v1521
        %v1787 = vpop.f32.mrb[0].mxu0
        %v1788 = vadd.f32 %v1591, %v1787
        %v1789 = vpop.f32.mrb[0].mxu0
        %v1790 = vadd.f32 %v1591, %v1789
        %1791 = vmatprep.mubr.f32.mxu0 %v1524
        %1792 = vmatmul.mubr.f32.gmra.mrb[0].mxu0 %v1523
        %v1793 = vpop.f32.mrb[0].mxu0
        %v1794 = vadd.f32 %v1595, %v1793
        %v1795 = vpop.f32.mrb[0].mxu0
        %v1796 = vadd.f32 %v1595, %v1795
        %1797 = vmatprep.mubr.f32.mxu0 %v1526
        %1798 = vmatmul.mubr.f32.gmra.mrb[0].mxu0 %v1525
        %v1799 = vpop.f32.mrb[0].mxu0
        %v1800 = vadd.f32 %v1599, %v1799
        %v1801 = vpop.f32.mrb[0].mxu0
        %v1802 = vadd.f32 %v1599, %v1801
        %1803 = vmatprep.mubr.f32.mxu0 %v1528
        %1804 = vmatmul.mubr.f32.gmra.mrb[0].mxu0 %v1527
        %v1805 = vpop.f32.mrb[0].mxu0
        %v1806 = vadd.f32 %v1603, %v1805
        %v1807 = vpop.f32.mrb[0].mxu0
        %v1808 = vadd.f32 %v1603, %v1807
        %1809 = vmatprep.mubr.f32.mxu0 %v1530
        %1810 = vmatmul.mubr.f32.gmra.mrb[0].mxu0 %v1529
        %v1811 = vpop.f32.mrb[0].mxu0
        %v1812 = vadd.f32 %v1607, %v1811
        %v1813 = vpop.f32.mrb[0].mxu0
        %v1814 = vadd.f32 %v1607, %v1813
        %1815 = vmatprep.mubr.f32.mxu0 %v1532
        %1816 = vmatmul.mubr.f32.gmra.mrb[0].mxu0 %v1531
        %v1817 = vpop.f32.mrb[0].mxu0
        %v1818 = vadd.f32 %v1611, %v1817
        %v1819 = vpop.f32.mrb[0].mxu0
        %v1820 = vadd.f32 %v1611, %v1819
        %1821 = vmatprep.mubr.f32.mxu0 %v1534
        %1822 = vmatmul.mubr.f32.gmra.mrb[0].mxu0 %v1533
        %v1823 = vpop.f32.mrb[0].mxu0
        %v1824 = vadd.f32 %v1615, %v1823
        %v1825 = vpop.f32.mrb[0].mxu0
        %v1826 = vadd.f32 %v1615, %v1825
        %1827 = vmatprep.mubr.f32.mxu0 %v1536
        %1828 = vmatmul.mubr.f32.gmra.mrb[0].mxu0 %v1535
        %v1829 = vpop.f32.mrb[0].mxu0
        %v1830 = vadd.f32 %v1619, %v1829
        %v1831 = vpop.f32.mrb[0].mxu0
        %v1832 = vadd.f32 %v1619, %v1831
        %1833 = vmatprep.mubr.f32.mxu0 %v1538
        %1834 = vmatmul.mubr.f32.gmra.mrb[0].mxu0 %v1537
        %v1835 = vpop.f32.mrb[0].mxu0
        %v1836 = vadd.f32 %v1623, %v1835
        %v1837 = vpop.f32.mrb[0].mxu0
        %v1838 = vadd.f32 %v1623, %v1837
        %1839 = vmatprep.mubr.f32.mxu0 %v1540
        %1840 = vmatmul.mubr.f32.gmra.mrb[0].mxu0 %v1539
        %v1841 = vpop.f32.mrb[0].mxu0
        %v1842 = vadd.f32 %v1627, %v1841
        %v1843 = vpop.f32.mrb[0].mxu0
        %v1844 = vadd.f32 %v1627, %v1843
        %1845 = vmatprep.mubr.f32.mxu0 %v1542
        %1846 = vmatmul.mubr.f32.gmra.mrb[0].mxu0 %v1541
        %v1847 = vpop.f32.mrb[0].mxu0
        %v1848 = vadd.f32 %v1631, %v1847
        %v1849 = vpop.f32.mrb[0].mxu0
        %v1850 = vadd.f32 %v1631, %v1849
        %1851 = vmatprep.mubr.f32.mxu0 %v1544
        %1852 = vmatmul.mubr.f32.gmra.mrb[0].mxu0 %v1543
        %v1853 = vpop.f32.mrb[0].mxu0
        %v1854 = vadd.f32 %v1635, %v1853
        %v1855 = vpop.f32.mrb[0].mxu0
        %v1856 = vadd.f32 %v1635, %v1855
        %1857 = vmatprep.mubr.f32.mxu0 %v1546
        %1858 = vmatmul.mubr.f32.gmra.mrb[0].mxu0 %v1545
        %v1859 = vpop.f32.mrb[0].mxu0
        %v1860 = vadd.f32 %v1639, %v1859
        %v1861 = vpop.f32.mrb[0].mxu0
        %v1862 = vadd.f32 %v1639, %v1861
        %1863 = vmatprep.mubr.f32.mxu0 %v1548
        %1864 = vmatmul.mubr.f32.gmra.mrb[0].mxu0 %v1547
        %v1865 = vpop.f32.mrb[0].mxu0
        %v1866 = vadd.f32 %v1643, %v1865
        %v1867 = vpop.f32.mrb[0].mxu0
        %v1868 = vadd.f32 %v1643, %v1867
        %1869 = vmatprep.mubr.f32.mxu0 %v1550
        %1870 = vmatmul.mubr.f32.gmra.mrb[0].mxu0 %v1549
        %v1871 = vpop.f32.mrb[0].mxu0
        %v1872 = vadd.f32 %v1647, %v1871
        %v1873 = vpop.f32.mrb[0].mxu0
        %v1874 = vadd.f32 %v1647, %v1873
        %1875 = vmatprep.mubr.f32.mxu0 %v1552
        %1876 = vmatmul.mubr.f32.gmra.mrb[0].mxu0 %v1551
        %v1877 = vpop.f32.mrb[0].mxu0
        %v1878 = vadd.f32 %v1651, %v1877
        %v1879 = vpop.f32.mrb[0].mxu0
        %v1880 = vadd.f32 %v1651, %v1879
        %1881 = vmatprep.mubr.f32.mxu0 %v1554
        %1882 = vmatmul.mubr.f32.gmra.mrb[0].mxu0 %v1553
        %v1883 = vpop.f32.mrb[0].mxu0
        %v1884 = vadd.f32 %v1655, %v1883
        %v1885 = vpop.f32.mrb[0].mxu0
        %v1886 = vadd.f32 %v1655, %v1885
        %1887 = vmatprep.mubr.f32.mxu0 %v1556
        %1888 = vmatmul.mubr.f32.gmra.mrb[0].mxu0 %v1555
        %v1889 = vpop.f32.mrb[0].mxu0
        %v1890 = vadd.f32 %v1659, %v1889
        %v1891 = vpop.f32.mrb[0].mxu0
        %v1892 = vadd.f32 %v1659, %v1891
        %1893 = vmatprep.mubr.f32.mxu0 %v1558
        %1894 = vmatmul.mubr.f32.gmra.mrb[0].mxu0 %v1557
        %v1895 = vpop.f32.mrb[0].mxu0
        %v1896 = vadd.f32 %v1663, %v1895
        %v1897 = vpop.f32.mrb[0].mxu0
        %v1898 = vadd.f32 %v1663, %v1897
        %1899 = vmatprep.mubr.f32.mxu0 %v1560
        %1900 = vmatmul.mubr.f32.gmra.mrb[0].mxu0 %v1559
        %v1901 = vpop.f32.mrb[0].mxu0
        %v1902 = vadd.f32 %v1667, %v1901
        %v1903 = vpop.f32.mrb[0].mxu0
        %v1904 = vadd.f32 %v1667, %v1903
        %1905 = vmatprep.mubr.f32.mxu0 %v1562
        %1906 = vmatmul.mubr.f32.gmra.mrb[0].mxu0 %v1561
        %v1907 = vpop.f32.mrb[0].mxu0
        %v1908 = vadd.f32 %v1671, %v1907
        %v1909 = vpop.f32.mrb[0].mxu0
        %v1910 = vadd.f32 %v1671, %v1909
        %1911 = vmatprep.mubr.f32.mxu0 %v1564
        %1912 = vmatmul.mubr.f32.gmra.mrb[0].mxu0 %v1563
        %v1913 = vpop.f32.mrb[0].mxu0
        %v1914 = vadd.f32 %v1675, %v1913
        %v1915 = vpop.f32.mrb[0].mxu0
        %v1916 = vadd.f32 %v1675, %v1915
        %1917 = vmatprep.mubr.f32.mxu0 %v1566
        %1918 = vmatmul.mubr.f32.gmra.mrb[0].mxu0 %v1565
        %v1919 = vpop.f32.mrb[0].mxu0
        %v1920 = vadd.f32 %v1679, %v1919
        %v1921 = vpop.f32.mrb[0].mxu0
        %v1922 = vadd.f32 %v1679, %v1921
        %1923 = vmatprep.mubr.f32.mxu0 %v1568
        %1924 = vmatmul.mubr.f32.gmra.mrb[0].mxu0 %v1567
        %v1925 = vpop.f32.mrb[0].mxu0
        %v1926 = vadd.f32 %v1683, %v1925
        %v1927 = vpop.f32.mrb[0].mxu0
        %v1928 = vadd.f32 %v1683, %v1927
        %1929 = vmatprep.mubr.f32.mxu0 %v1570
        %1930 = vmatmul.mubr.f32.gmra.mrb[0].mxu0 %v1569
        %v1931 = vpop.f32.mrb[0].mxu0
        %v1932 = vadd.f32 %v1687, %v1931
        %v1933 = vpop.f32.mrb[0].mxu0
        %v1934 = vadd.f32 %v1687, %v1933
        %1935 = vmatprep.mubr.f32.mxu0 %v1572
        %1936 = vmatmul.mubr.f32.gmra.mrb[0].mxu0 %v1571
        %v1937 = vpop.f32.mrb[0].mxu0
        %v1938 = vadd.f32 %v1691, %v1937
        %v1939 = vpop.f32.mrb[0].mxu0
        %v1940 = vadd.f32 %v1691, %v1939
        %1941 = vmatprep.mubr.f32.mxu0 %v1574
        %1942 = vmatmul.mubr.f32.gmra.mrb[0].mxu0 %v1573
        %v1943 = vpop.f32.mrb[0].mxu0
        %v1944 = vadd.f32 %v1695, %v1943
        %v1945 = vpop.f32.mrb[0].mxu0
        %v1946 = vadd.f32 %v1695, %v1945
        %1947 = vmatprep.mubr.f32.mxu0 %v1576
        %1948 = vmatmul.mubr.f32.gmra.mrb[0].mxu0 %v1575
        %v1949 = vpop.f32.mrb[0].mxu0
        %v1950 = vadd.f32 %v1699, %v1949
        %v1951 = vpop.f32.mrb[0].mxu0
        %v1952 = vadd.f32 %v1699, %v1951
        %1953 = vmatprep.mubr.f32.mxu0 %v1578
        %1954 = vmatmul.mubr.f32.gmra.mrb[0].mxu0 %v1577
        %v1955 = vpop.f32.mrb[0].mxu0
        %v1956 = vadd.f32 %v1703, %v1955
        %v1957 = vpop.f32.mrb[0].mxu0
        %v1958 = vadd.f32 %v1703, %v1957
        %1959 = vmatprep.mubr.f32.mxu0 %v1580
        %1960 = vmatmul.mubr.f32.gmra.mrb[0].mxu0 %v1579
        %v1961 = vpop.f32.mrb[0].mxu0
        %v1962 = vadd.f32 %v1707, %v1961
        %v1963 = vpop.f32.mrb[0].mxu0
        %v1964 = vadd.f32 %v1707, %v1963
        %1965 = vdwg.mxu0
        %vm1966 = vcmp.gt.f32.partialorder %v1776, 0.0
        %vm1967 = vcmp.gt.f32.partialorder %v1778, 0.0
        %vm1968 = vcmp.gt.f32.partialorder %v1782, 0.0
        %vm1969 = vcmp.gt.f32.partialorder %v1784, 0.0
        %vm1970 = vcmp.gt.f32.partialorder %v1788, 0.0
        %vm1971 = vcmp.gt.f32.partialorder %v1790, 0.0
        %vm1972 = vcmp.gt.f32.partialorder %v1794, 0.0
        %vm1973 = vcmp.gt.f32.partialorder %v1796, 0.0
        %vm1974 = vcmp.gt.f32.partialorder %v1800, 0.0
        %vm1975 = vcmp.gt.f32.partialorder %v1802, 0.0
        %vm1976 = vcmp.gt.f32.partialorder %v1806, 0.0
        %vm1977 = vcmp.gt.f32.partialorder %v1808, 0.0
        %vm1978 = vcmp.gt.f32.partialorder %v1812, 0.0
        %vm1979 = vcmp.gt.f32.partialorder %v1814, 0.0
        %vm1980 = vcmp.gt.f32.partialorder %v1818, 0.0
        %vm1981 = vcmp.gt.f32.partialorder %v1820, 0.0
        %vm1982 = vcmp.gt.f32.partialorder %v1824, 0.0
        %vm1983 = vcmp.gt.f32.partialorder %v1826, 0.0
        %vm1984 = vcmp.gt.f32.partialorder %v1830, 0.0
        %vm1985 = vcmp.gt.f32.partialorder %v1832, 0.0
        %vm1986 = vcmp.gt.f32.partialorder %v1836, 0.0
        %vm1987 = vcmp.gt.f32.partialorder %v1838, 0.0
        %vm1988 = vcmp.gt.f32.partialorder %v1842, 0.0
        %vm1989 = vcmp.gt.f32.partialorder %v1844, 0.0
        %vm1990 = vcmp.gt.f32.partialorder %v1848, 0.0
        %vm1991 = vcmp.gt.f32.partialorder %v1850, 0.0
        %vm1992 = vcmp.gt.f32.partialorder %v1854, 0.0
        %vm1993 = vcmp.gt.f32.partialorder %v1856, 0.0
        %vm1994 = vcmp.gt.f32.partialorder %v1860, 0.0
        %vm1995 = vcmp.gt.f32.partialorder %v1862, 0.0
        %vm1996 = vcmp.gt.f32.partialorder %v1866, 0.0
        %vm1997 = vcmp.gt.f32.partialorder %v1868, 0.0
        %vm1998 = vcmp.gt.f32.partialorder %v1872, 0.0
        %vm1999 = vcmp.gt.f32.partialorder %v1874, 0.0
        %vm2000 = vcmp.gt.f32.partialorder %v1878, 0.0
        %vm2001 = vcmp.gt.f32.partialorder %v1880, 0.0
        %vm2002 = vcmp.gt.f32.partialorder %v1884, 0.0
        %vm2003 = vcmp.gt.f32.partialorder %v1886, 0.0
        %vm2004 = vcmp.gt.f32.partialorder %v1890, 0.0
        %vm2005 = vcmp.gt.f32.partialorder %v1892, 0.0
        %vm2006 = vcmp.gt.f32.partialorder %v1896, 0.0
        %vm2007 = vcmp.gt.f32.partialorder %v1898, 0.0
        %vm2008 = vcmp.gt.f32.partialorder %v1902, 0.0
        %vm2009 = vcmp.gt.f32.partialorder %v1904, 0.0
        %vm2010 = vcmp.gt.f32.partialorder %v1908, 0.0
        %vm2011 = vcmp.gt.f32.partialorder %v1910, 0.0
        %vm2012 = vcmp.gt.f32.partialorder %v1914, 0.0
        %vm2013 = vcmp.gt.f32.partialorder %v1916, 0.0
        %vm2014 = vcmp.gt.f32.partialorder %v1920, 0.0
        %vm2015 = vcmp.gt.f32.partialorder %v1922, 0.0
        %vm2016 = vcmp.gt.f32.partialorder %v1926, 0.0
        %vm2017 = vcmp.gt.f32.partialorder %v1928, 0.0
        %vm2018 = vcmp.gt.f32.partialorder %v1932, 0.0
        %vm2019 = vcmp.gt.f32.partialorder %v1934, 0.0
        %vm2020 = vcmp.gt.f32.partialorder %v1938, 0.0
        %vm2021 = vcmp.gt.f32.partialorder %v1940, 0.0
        %vm2022 = vcmp.gt.f32.partialorder %v1944, 0.0
        %vm2023 = vcmp.gt.f32.partialorder %v1946, 0.0
        %vm2024 = vcmp.gt.f32.partialorder %v1950, 0.0
        %vm2025 = vcmp.gt.f32.partialorder %v1952, 0.0
        %vm2026 = vcmp.gt.f32.partialorder %v1956, 0.0
        %vm2027 = vcmp.gt.f32.partialorder %v1958, 0.0
        %vm2028 = vcmp.gt.f32.partialorder %v1962, 0.0
        %vm2029 = vcmp.gt.f32.partialorder %v1964, 0.0
        %v2030 = vmul.f32 %v1776, 0.2
        %v2031 = vmul.f32 %v1778, 0.2
        %v2032 = vmul.f32 %v1782, 0.2
        %v2033 = vmul.f32 %v1784, 0.2
        %v2034 = vmul.f32 %v1788, 0.2
        %v2035 = vmul.f32 %v1790, 0.2
        %v2036 = vmul.f32 %v1794, 0.2
        %v2037 = vmul.f32 %v1796, 0.2
        %v2038 = vmul.f32 %v1800, 0.2
        %v2039 = vmul.f32 %v1802, 0.2
        %v2040 = vmul.f32 %v1806, 0.2
        %v2041 = vmul.f32 %v1808, 0.2
        %v2042 = vmul.f32 %v1812, 0.2
        %v2043 = vmul.f32 %v1814, 0.2
        %v2044 = vmul.f32 %v1818, 0.2
        %v2045 = vmul.f32 %v1820, 0.2
        %v2046 = vmul.f32 %v1824, 0.2
        %v2047 = vmul.f32 %v1826, 0.2
        %v2048 = vmul.f32 %v1830, 0.2
        %v2049 = vmul.f32 %v1832, 0.2
        %v2050 = vmul.f32 %v1836, 0.2
        %v2051 = vmul.f32 %v1838, 0.2
        %v2052 = vmul.f32 %v1842, 0.2
        %v2053 = vmul.f32 %v1844, 0.2
        %v2054 = vmul.f32 %v1848, 0.2
        %v2055 = vmul.f32 %v1850, 0.2
        %v2056 = vmul.f32 %v1854, 0.2
        %v2057 = vmul.f32 %v1856, 0.2
        %v2058 = vmul.f32 %v1860, 0.2
        %v2059 = vmul.f32 %v1862, 0.2
        %v2060 = vmul.f32 %v1866, 0.2
        %v2061 = vmul.f32 %v1868, 0.2
        %v2062 = vmul.f32 %v1872, 0.2
        %v2063 = vmul.f32 %v1874, 0.2
        %v2064 = vmul.f32 %v1878, 0.2
        %v2065 = vmul.f32 %v1880, 0.2
        %v2066 = vmul.f32 %v1884, 0.2
        %v2067 = vmul.f32 %v1886, 0.2
        %v2068 = vmul.f32 %v1890, 0.2
        %v2069 = vmul.f32 %v1892, 0.2
        %v2070 = vmul.f32 %v1896, 0.2
        %v2071 = vmul.f32 %v1898, 0.2
        %v2072 = vmul.f32 %v1902, 0.2
        %v2073 = vmul.f32 %v1904, 0.2
        %v2074 = vmul.f32 %v1908, 0.2
        %v2075 = vmul.f32 %v1910, 0.2
        %v2076 = vmul.f32 %v1914, 0.2
        %v2077 = vmul.f32 %v1916, 0.2
        %v2078 = vmul.f32 %v1920, 0.2
        %v2079 = vmul.f32 %v1922, 0.2
        %v2080 = vmul.f32 %v1926, 0.2
        %v2081 = vmul.f32 %v1928, 0.2
        %v2082 = vmul.f32 %v1932, 0.2
        %v2083 = vmul.f32 %v1934, 0.2
        %v2084 = vmul.f32 %v1938, 0.2
        %v2085 = vmul.f32 %v1940, 0.2
        %v2086 = vmul.f32 %v1944, 0.2
        %v2087 = vmul.f32 %v1946, 0.2
        %v2088 = vmul.f32 %v1950, 0.2
        %v2089 = vmul.f32 %v1952, 0.2
        %v2090 = vmul.f32 %v1956, 0.2
        %v2091 = vmul.f32 %v1958, 0.2
        %v2092 = vmul.f32 %v1962, 0.2
        %v2093 = vmul.f32 %v1964, 0.2
        %v2094 = vsel %vm1966, %v1776, %v2030
        %v2095 = vsel %vm1967, %v1778, %v2031
        %v2096 = vsel %vm1968, %v1782, %v2032
        %v2097 = vsel %vm1969, %v1784, %v2033
        %v2098 = vsel %vm1970, %v1788, %v2034
        %v2099 = vsel %vm1971, %v1790, %v2035
        %v2100 = vsel %vm1972, %v1794, %v2036
        %v2101 = vsel %vm1973, %v1796, %v2037
        %v2102 = vsel %vm1974, %v1800, %v2038
        %v2103 = vsel %vm1975, %v1802, %v2039
        %v2104 = vsel %vm1976, %v1806, %v2040
        %v2105 = vsel %vm1977, %v1808, %v2041
        %v2106 = vsel %vm1978, %v1812, %v2042
        %v2107 = vsel %vm1979, %v1814, %v2043
        %v2108 = vsel %vm1980, %v1818, %v2044
        %v2109 = vsel %vm1981, %v1820, %v2045
        %v2110 = vsel %vm1982, %v1824, %v2046
        %v2111 = vsel %vm1983, %v1826, %v2047
        %v2112 = vsel %vm1984, %v1830, %v2048
        %v2113 = vsel %vm1985, %v1832, %v2049
        %v2114 = vsel %vm1986, %v1836, %v2050
        %v2115 = vsel %vm1987, %v1838, %v2051
        %v2116 = vsel %vm1988, %v1842, %v2052
        %v2117 = vsel %vm1989, %v1844, %v2053
        %v2118 = vsel %vm1990, %v1848, %v2054
        %v2119 = vsel %vm1991, %v1850, %v2055
        %v2120 = vsel %vm1992, %v1854, %v2056
        %v2121 = vsel %vm1993, %v1856, %v2057
        %v2122 = vsel %vm1994, %v1860, %v2058
        %v2123 = vsel %vm1995, %v1862, %v2059
        %v2124 = vsel %vm1996, %v1866, %v2060
        %v2125 = vsel %vm1997, %v1868, %v2061
        %v2126 = vsel %vm1998, %v1872, %v2062
        %v2127 = vsel %vm1999, %v1874, %v2063
        %v2128 = vsel %vm2000, %v1878, %v2064
        %v2129 = vsel %vm2001, %v1880, %v2065
        %v2130 = vsel %vm2002, %v1884, %v2066
        %v2131 = vsel %vm2003, %v1886, %v2067
        %v2132 = vsel %vm2004, %v1890, %v2068
        %v2133 = vsel %vm2005, %v1892, %v2069
        %v2134 = vsel %vm2006, %v1896, %v2070
        %v2135 = vsel %vm2007, %v1898, %v2071
        %v2136 = vsel %vm2008, %v1902, %v2072
        %v2137 = vsel %vm2009, %v1904, %v2073
        %v2138 = vsel %vm2010, %v1908, %v2074
        %v2139 = vsel %vm2011, %v1910, %v2075
        %v2140 = vsel %vm2012, %v1914, %v2076
        %v2141 = vsel %vm2013, %v1916, %v2077
        %v2142 = vsel %vm2014, %v1920, %v2078
        %v2143 = vsel %vm2015, %v1922, %v2079
        %v2144 = vsel %vm2016, %v1926, %v2080
        %v2145 = vsel %vm2017, %v1928, %v2081
        %v2146 = vsel %vm2018, %v1932, %v2082
        %v2147 = vsel %vm2019, %v1934, %v2083
        %v2148 = vsel %vm2020, %v1938, %v2084
        %v2149 = vsel %vm2021, %v1940, %v2085
        %v2150 = vsel %vm2022, %v1944, %v2086
        %v2151 = vsel %vm2023, %v1946, %v2087
        %v2152 = vsel %vm2024, %v1950, %v2088
        %v2153 = vsel %vm2025, %v1952, %v2089
        %v2154 = vsel %vm2026, %v1956, %v2090
        %v2155 = vsel %vm2027, %v1958, %v2091
        %v2156 = vsel %vm2028, %v1962, %v2092
        %v2157 = vsel %vm2029, %v1964, %v2093
        %2158 = vset.pattern.permute.xlu0 4
        %2159 = vperm.xlu0 %2158, %v224
        %v2160 = vpop.permute.xlu0 %2159
        %2162 = vset.pattern.permute.xlu0 4
        %2163 = vperm.xlu0 %2162, %v225
        %v2164 = vpop.permute.xlu0 %2163
        %2166 = vset.pattern.permute.xlu0 4
        %2167 = vperm.xlu0 %2166, %v226
        %v2168 = vpop.permute.xlu0 %2167
        %2170 = vset.pattern.permute.xlu0 4
        %2171 = vperm.xlu0 %2170, %v227
        %v2172 = vpop.permute.xlu0 %2171
        %2174 = vset.pattern.permute.xlu0 4
        %2175 = vperm.xlu0 %2174, %v228
        %v2176 = vpop.permute.xlu0 %2175
        %2178 = vset.pattern.permute.xlu0 4
        %2179 = vperm.xlu0 %2178, %v229
        %v2180 = vpop.permute.xlu0 %2179
        %2182 = vset.pattern.permute.xlu0 4
        %2183 = vperm.xlu0 %2182, %v230
        %v2184 = vpop.permute.xlu0 %2183
        %2186 = vset.pattern.permute.xlu0 4
        %2187 = vperm.xlu0 %2186, %v231
        %v2188 = vpop.permute.xlu0 %2187
        %2190 = vset.pattern.permute.xlu0 4
        %2191 = vperm.xlu0 %2190, %v232
        %v2192 = vpop.permute.xlu0 %2191
        %2194 = vset.pattern.permute.xlu0 4
        %2195 = vperm.xlu0 %2194, %v233
        %v2196 = vpop.permute.xlu0 %2195
        %2198 = vset.pattern.permute.xlu0 4
        %2199 = vperm.xlu0 %2198, %v234
        %v2200 = vpop.permute.xlu0 %2199
        %2202 = vset.pattern.permute.xlu0 4
        %2203 = vperm.xlu0 %2202, %v235
        %v2204 = vpop.permute.xlu0 %2203
        %2206 = vset.pattern.permute.xlu0 4
        %2207 = vperm.xlu0 %2206, %v236
        %v2208 = vpop.permute.xlu0 %2207
        %2210 = vset.pattern.permute.xlu0 4
        %2211 = vperm.xlu0 %2210, %v237
        %v2212 = vpop.permute.xlu0 %2211
        %2214 = vset.pattern.permute.xlu0 4
        %2215 = vperm.xlu0 %2214, %v238
        %v2216 = vpop.permute.xlu0 %2215
        %2218 = vset.pattern.permute.xlu0 4
        %2219 = vperm.xlu0 %2218, %v239
        %v2220 = vpop.permute.xlu0 %2219
        %2222 = vset.pattern.permute.xlu0 4
        %2223 = vperm.xlu0 %2222, %v240
        %v2224 = vpop.permute.xlu0 %2223
        %2226 = vset.pattern.permute.xlu0 4
        %2227 = vperm.xlu0 %2226, %v241
        %v2228 = vpop.permute.xlu0 %2227
        %2230 = vset.pattern.permute.xlu0 4
        %2231 = vperm.xlu0 %2230, %v242
        %v2232 = vpop.permute.xlu0 %2231
        %2234 = vset.pattern.permute.xlu0 4
        %2235 = vperm.xlu0 %2234, %v243
        %v2236 = vpop.permute.xlu0 %2235
        %2238 = vset.pattern.permute.xlu0 4
        %2239 = vperm.xlu0 %2238, %v244
        %v2240 = vpop.permute.xlu0 %2239
        %2242 = vset.pattern.permute.xlu0 4
        %2243 = vperm.xlu0 %2242, %v245
        %v2244 = vpop.permute.xlu0 %2243
        %2246 = vset.pattern.permute.xlu0 4
        %2247 = vperm.xlu0 %2246, %v246
        %v2248 = vpop.permute.xlu0 %2247
        %2250 = vset.pattern.permute.xlu0 4
        %2251 = vperm.xlu0 %2250, %v247
        %v2252 = vpop.permute.xlu0 %2251
        %2254 = vset.pattern.permute.xlu0 4
        %2255 = vperm.xlu0 %2254, %v248
        %v2256 = vpop.permute.xlu0 %2255
        %2258 = vset.pattern.permute.xlu0 4
        %2259 = vperm.xlu0 %2258, %v249
        %v2260 = vpop.permute.xlu0 %2259
        %2262 = vset.pattern.permute.xlu0 4
        %2263 = vperm.xlu0 %2262, %v250
        %v2264 = vpop.permute.xlu0 %2263
        %2266 = vset.pattern.permute.xlu0 4
        %2267 = vperm.xlu0 %2266, %v251
        %v2268 = vpop.permute.xlu0 %2267
        %2270 = vset.pattern.permute.xlu0 4
        %2271 = vperm.xlu0 %2270, %v252
        %v2272 = vpop.permute.xlu0 %2271
        %2274 = vset.pattern.permute.xlu0 4
        %2275 = vperm.xlu0 %2274, %v253
        %v2276 = vpop.permute.xlu0 %2275
        %2278 = vset.pattern.permute.xlu0 4
        %2279 = vperm.xlu0 %2278, %v254
        %v2280 = vpop.permute.xlu0 %2279
        %2282 = vset.pattern.permute.xlu0 4
        %2283 = vperm.xlu0 %2282, %v255
        %v2284 = vpop.permute.xlu0 %2283
        %v2286 = vmul.f32 %v2160, %v2094
        %v2287 = vmul.f32 %v2160, %v2095
        %v2288 = vmul.f32 %v2164, %v2096
        %v2289 = vmul.f32 %v2164, %v2097
        %v2290 = vmul.f32 %v2168, %v2098
        %v2291 = vmul.f32 %v2168, %v2099
        %v2292 = vmul.f32 %v2172, %v2100
        %v2293 = vmul.f32 %v2172, %v2101
        %v2294 = vmul.f32 %v2176, %v2102
        %v2295 = vmul.f32 %v2176, %v2103
        %v2296 = vmul.f32 %v2180, %v2104
        %v2297 = vmul.f32 %v2180, %v2105
        %v2298 = vmul.f32 %v2184, %v2106
        %v2299 = vmul.f32 %v2184, %v2107
        %v2300 = vmul.f32 %v2188, %v2108
        %v2301 = vmul.f32 %v2188, %v2109
        %v2302 = vmul.f32 %v2192, %v2110
        %v2303 = vmul.f32 %v2192, %v2111
        %v2304 = vmul.f32 %v2196, %v2112
        %v2305 = vmul.f32 %v2196, %v2113
        %v2306 = vmul.f32 %v2200, %v2114
        %v2307 = vmul.f32 %v2200, %v2115
        %v2308 = vmul.f32 %v2204, %v2116
        %v2309 = vmul.f32 %v2204, %v2117
        %v2310 = vmul.f32 %v2208, %v2118
        %v2311 = vmul.f32 %v2208, %v2119
        %v2312 = vmul.f32 %v2212, %v2120
        %v2313 = vmul.f32 %v2212, %v2121
        %v2314 = vmul.f32 %v2216, %v2122
        %v2315 = vmul.f32 %v2216, %v2123
        %v2316 = vmul.f32 %v2220, %v2124
        %v2317 = vmul.f32 %v2220, %v2125
        %v2318 = vmul.f32 %v2224, %v2126
        %v2319 = vmul.f32 %v2224, %v2127
        %v2320 = vmul.f32 %v2228, %v2128
        %v2321 = vmul.f32 %v2228, %v2129
        %v2322 = vmul.f32 %v2232, %v2130
        %v2323 = vmul.f32 %v2232, %v2131
        %v2324 = vmul.f32 %v2236, %v2132
        %v2325 = vmul.f32 %v2236, %v2133
        %v2326 = vmul.f32 %v2240, %v2134
        %v2327 = vmul.f32 %v2240, %v2135
        %v2328 = vmul.f32 %v2244, %v2136
        %v2329 = vmul.f32 %v2244, %v2137
        %v2330 = vmul.f32 %v2248, %v2138
        %v2331 = vmul.f32 %v2248, %v2139
        %v2332 = vmul.f32 %v2252, %v2140
        %v2333 = vmul.f32 %v2252, %v2141
        %v2334 = vmul.f32 %v2256, %v2142
        %v2335 = vmul.f32 %v2256, %v2143
        %v2336 = vmul.f32 %v2260, %v2144
        %v2337 = vmul.f32 %v2260, %v2145
        %v2338 = vmul.f32 %v2264, %v2146
        %v2339 = vmul.f32 %v2264, %v2147
        %v2340 = vmul.f32 %v2268, %v2148
        %v2341 = vmul.f32 %v2268, %v2149
        %v2342 = vmul.f32 %v2272, %v2150
        %v2343 = vmul.f32 %v2272, %v2151
        %v2344 = vmul.f32 %v2276, %v2152
        %v2345 = vmul.f32 %v2276, %v2153
        %v2346 = vmul.f32 %v2280, %v2154
        %v2347 = vmul.f32 %v2280, %v2155
        %v2348 = vmul.f32 %v2284, %v2156
        %v2349 = vmul.f32 %v2284, %v2157
        %v2350 = vadd.f32 %v2286, %v2288
        %v2351 = vadd.f32 %v2350, %v2290
        %v2352 = vadd.f32 %v2351, %v2292
        %v2353 = vadd.f32 %v2352, %v2294
        %v2354 = vadd.f32 %v2353, %v2296
        %v2355 = vadd.f32 %v2354, %v2298
        %v2356 = vadd.f32 %v2355, %v2300
        %v2357 = vadd.f32 %v2356, %v2302
        %v2358 = vadd.f32 %v2357, %v2304
        %v2359 = vadd.f32 %v2358, %v2306
        %v2360 = vadd.f32 %v2359, %v2308
        %v2361 = vadd.f32 %v2360, %v2310
        %v2362 = vadd.f32 %v2361, %v2312
        %v2363 = vadd.f32 %v2362, %v2314
        %v2364 = vadd.f32 %v2363, %v2316
        %v2365 = vadd.f32 %v2364, %v2318
        %v2366 = vadd.f32 %v2365, %v2320
        %v2367 = vadd.f32 %v2366, %v2322
        %v2368 = vadd.f32 %v2367, %v2324
        %v2369 = vadd.f32 %v2368, %v2326
        %v2370 = vadd.f32 %v2369, %v2328
        %v2371 = vadd.f32 %v2370, %v2330
        %v2372 = vadd.f32 %v2371, %v2332
        %v2373 = vadd.f32 %v2372, %v2334
        %v2374 = vadd.f32 %v2373, %v2336
        %v2375 = vadd.f32 %v2374, %v2338
        %v2376 = vadd.f32 %v2375, %v2340
        %v2377 = vadd.f32 %v2376, %v2342
        %v2378 = vadd.f32 %v2377, %v2344
        %v2379 = vadd.f32 %v2378, %v2346
        %v2380 = vadd.f32 %v2379, %v2348
        %v2381 = vrot.slane %v2380, 4
        %v2382 = vadd.f32 %v2380, %v2381
        %v2383 = vrot.slane %v2382, 2
        %v2384 = vadd.f32 %v2382, %v2383
        %v2385 = vrot.slane %v2384, 1
        %v2386 = vadd.f32 %v2384, %v2385
        %v2387 = vadd.f32 %v2287, %v2289
        %v2388 = vadd.f32 %v2387, %v2291
        %v2389 = vadd.f32 %v2388, %v2293
        %v2390 = vadd.f32 %v2389, %v2295
        %v2391 = vadd.f32 %v2390, %v2297
        %v2392 = vadd.f32 %v2391, %v2299
        %v2393 = vadd.f32 %v2392, %v2301
        %v2394 = vadd.f32 %v2393, %v2303
        %v2395 = vadd.f32 %v2394, %v2305
        %v2396 = vadd.f32 %v2395, %v2307
        %v2397 = vadd.f32 %v2396, %v2309
        %v2398 = vadd.f32 %v2397, %v2311
        %v2399 = vadd.f32 %v2398, %v2313
        %v2400 = vadd.f32 %v2399, %v2315
        %v2401 = vadd.f32 %v2400, %v2317
        %v2402 = vadd.f32 %v2401, %v2319
        %v2403 = vadd.f32 %v2402, %v2321
        %v2404 = vadd.f32 %v2403, %v2323
        %v2405 = vadd.f32 %v2404, %v2325
        %v2406 = vadd.f32 %v2405, %v2327
        %v2407 = vadd.f32 %v2406, %v2329
        %v2408 = vadd.f32 %v2407, %v2331
        %v2409 = vadd.f32 %v2408, %v2333
        %v2410 = vadd.f32 %v2409, %v2335
        %v2411 = vadd.f32 %v2410, %v2337
        %v2412 = vadd.f32 %v2411, %v2339
        %v2413 = vadd.f32 %v2412, %v2341
        %v2414 = vadd.f32 %v2413, %v2343
        %v2415 = vadd.f32 %v2414, %v2345
        %v2416 = vadd.f32 %v2415, %v2347
        %v2417 = vadd.f32 %v2416, %v2349
        %v2418 = vrot.slane %v2417, 4
        %v2419 = vadd.f32 %v2417, %v2418
        %v2420 = vrot.slane %v2419, 2
        %v2421 = vadd.f32 %v2419, %v2420
        %v2422 = vrot.slane %v2421, 1
        %v2423 = vadd.f32 %v2421, %v2422
        %2425 = vset.pattern.permute.xlu0 5
        %2426 = vperm.xlu0 %2425, %v256
        %v2427 = vpop.permute.xlu0 %2426
        %v2429 = vadd.f32 %v2386, %v2427
        %v2430 = vadd.f32 %v2423, %v2427
        %v2431 = vxor.u32 %v2429, 2147483648
        %v2432 = vxor.u32 %v2430, 2147483648
        %v2433 = vmul.f32 %v2431, 1.442695
        %v2434 = vpow.pop %v2433
        %v2435 = vmul.f32 %v2432, 1.442695
        %v2436 = vpow.pop %v2435
        %v2437 = vadd.f32 %v2434, 1.0
        %v2438 = vadd.f32 %v2436, 1.0
        %v2439 = vrcp.pop %v2437
        %v2440 = vmul.f32 1.0, %v2439
        %v2441 = vrcp.pop %v2438
        %v2442 = vmul.f32 1.0, %v2441
        %v2445 = vcombine.low %v2440, %v2442
        %v2447 = vunpack.c.l.s4 1966171168
        %v2448 = vunpack.c.0.s8 %v2447
        %v2449 = vlaneseq
        %v2450 = vshrl.u32 %v2449, 7
        %v2451 = vsub.s32 %v2448, %v2450
        %v2452 = vrot.slane %v2445, %v2451
        %v2454 = vunpack.c.l.s4 1966171168
        %v2455 = vunpack.c.0.s8 %v2454
        %v2456 = vlaneseq
        %v2457 = vshrl.u32 %v2456, 7
        %v2458 = vsub.s32 %v2455, %v2457
        %v2459 = vrot.slane %v2452, %v2458
        %v2461 = vlaneseq
        %vm2462 = vcmp.ge.s32.totalorder %v2461, 0
        %vm2463 = vcmp.lt.s32.totalorder %v2461, 256
        %vm2464 = vmand %vm2462, %vm2463
        %2465 = vst.msk [vmem:[%s218] sm:$0x3] %vm2464, %v2459
        %s2466 = sand.u32 %s117, 1
        %s2467 = scalar_lea.sflag [#allocation4], %s2466
        %s2468 = sand.u32 %s117, 1
        %s2469 = smul.addr %s2468, 2
        %s2470 = scalar_lea.vmem [#allocation7], %s2469
        // Predicated region
        $region45: #{discriminator_forward.1} parent=35 // pred_check
          %p2471 = pneg %p127
        $region46: #{discriminator_forward.1} parent=35 // pred_check_branch
          %2473 = sbr.rel (%p2471) target = $region48
        $region47: #{discriminator_forward.1} parent=35 // pred_region
          %s2475 = ssub.s32 32, 32
          %2476 = vsyncadd %s2467, %s2475
          %s2477 = smul.addr %s20, 2
          %s2478 = smul.addr %s2477, 16
          %s2479 = scalar_lea.hbm %s4, %s2478
          %s2481 = sshll.u32 %s2470, 4
          %s2482 = int_to_ptr.vmem [resolvable:$true] %s2481
          %2484 = dma.vmem_to_hbm [thread:$0]  %s2482, 32, %s2479, %s2467
        $region48: #{discriminator_forward.1} parent=35 // pred_fallthru
          _
      $region36: #{discriminator_forward.1} parent=5 // pred_fallthru
        _
      %p2485 = scmp.le.s32.totalorder 2, %s15
      // Predicated region
      $region49: #{discriminator_forward.1} parent=5 // pred_check
        %p2486 = pneg %p2485
      $region50: #{discriminator_forward.1} parent=5 // pred_check_branch
        %2488 = sbr.rel (%p2486) target = $region52
      $region51: #{discriminator_forward.1} parent=5 // pred_region
        %s2489 = ssub.s32 %s15, 2
        // Predicated region
        $region53: #{discriminator_forward.1} parent=51 // pred_check
          %p2490 = pneg %p133
        $region54: #{discriminator_forward.1} parent=51 // pred_check_branch
          %2492 = sbr.rel (%p2490) target = $region56
        $region55: #{discriminator_forward.1} parent=51 // pred_region
          %s2493 = sand.u32 %s118, 1
          %s2494 = scalar_lea.sflag [#allocation4], %s2493
          %s2495 = sand.u32 %s118, 1
          %s2496 = smul.addr %s2495, 2
          %s2497 = scalar_lea.vmem [#allocation7], %s2496
          %2498 = dma.done %s2494, 32
        $region56: #{discriminator_forward.1} parent=51 // pred_fallthru
          _
      $region52: #{discriminator_forward.1} parent=5 // pred_fallthru
        _
    $region6: #{discriminator_forward.1} parent=1 // loop_footer
      %s19 = sadd.s32 1, %s15
    $region7: #{discriminator_forward.1} parent=1 // loop_footer_branch
      %14 = sbr.rel target = $region3
    $region8: #{discriminator_forward.1} parent=1 // loop_exit
      _
    %2499 = vsyncpa [#allocation3], 1
    %s2500 = scalar_lea.sflag [#allocation3], 1
    %2501 = vsyncpa %s2500, 1
    %2502 = vsyncpa [#allocation6], 1
    %2503 = vsyncpa [#allocation4], 1
    %s2504 = scalar_lea.sflag [#allocation4], 1
    %2505 = vsyncpa %s2504, 1

</llo_original>
